<compile_context>
chip_gen: v7x
topology: tpu7x:2x2x1
jax: 0.10.0
libtpu: 0.0.40
codegen_flags: <defaults>
</compile_context>

<pallas_src>
import math

import jax
import jax.numpy as jnp
from jax.experimental import pallas as pl
from jax.experimental.pallas import tpu as pltpu


def _round_up(a, b):
    return ((a + b - 1) // b) * b


def _attn_kernel_mxu(x_ref, w1_ref, b1_ref, w2_ref, b2_ref, a_ref):
    """General n_classes path: both layers on the MXU, bf16 operands, f32 acc."""
    h = jnp.dot(x_ref[...].astype(jnp.bfloat16), w1_ref[...],
                preferred_element_type=jnp.float32)
    h = jnp.tanh(h + b1_ref[...])
    a = jnp.dot(h.astype(jnp.bfloat16), w2_ref[...],
                preferred_element_type=jnp.float32) + b2_ref[...]
    a_ref[...] = a.astype(a_ref.dtype)


def _attn_kernel_vpu(x_ref, w1_ref, b1_ref, w2t_ref, b2_ref, a_ref):
    """n_classes == 1 path: second layer is a VPU multiply + lane reduce.

    w2t_ref is the transposed second-layer weight, shape (1, D), kept in f32.
    Avoids pushing a 1-wide matmul through the MXU/result FIFO.
    """
    h = jnp.dot(x_ref[...].astype(jnp.bfloat16), w1_ref[...],
                preferred_element_type=jnp.float32)
    h = jnp.tanh(h + b1_ref[...])                       # (tn, D) f32
    a = jnp.sum(h * w2t_ref[...], axis=-1, keepdims=True) + b2_ref[...]
    a_ref[...] = a.astype(a_ref.dtype)


def attn_net_forward(x, w1, b1, w2, b2, *, tn=512):
    """Pallas implementation of Attn_Net.forward.

    x : (N, L)   float32
    w1: (L, D)   b1: (1, D)
    w2: (D, C)   b2: (1, C)
    returns (A, x) with A: (N, C)  -- matches the PyTorch module's return.
    """
    N, L = x.shape
    D = w1.shape[1]
    C = w2.shape[1]

    # Effective row tile: multiple of 8 (sublane), never larger than padded N.
    n_pad8 = _round_up(max(N, 8), 8)
    tn_eff = min(_round_up(tn, 8), n_pad8)
    n_pad = _round_up(N, tn_eff)
    grid = (n_pad // tn_eff,)

    x_in = x
    if n_pad != N:
        # Zero-pad rows; padded rows produce garbage logits that are sliced off
        # below (callers must softmax only over the first N rows of A anyway).
        x_in = jnp.pad(x, ((0, n_pad - N), (0, 0)))

    # Resident weights: bf16 for MXU operands; biases stay f32 (added to the
    # f32 accumulator).
    w1_bf = w1.astype(jnp.bfloat16)
    b1_f = b1.astype(jnp.float32)
    b2_f = b2.astype(jnp.float32)

    if C == 1:
        kernel = _attn_kernel_vpu
        w2_arg = jnp.transpose(w2).astype(jnp.float32)          # (1, D)
        w2_spec = pl.BlockSpec((1, D), lambda i: (0, 0))
    else:
        kernel = _attn_kernel_mxu
        w2_arg = w2.astype(jnp.bfloat16)                        # (D, C)
        w2_spec = pl.BlockSpec((D, C), lambda i: (0, 0))

    a_pad = pl.pallas_call(
        kernel,
        out_shape=jax.ShapeDtypeStruct((n_pad, C), x.dtype),
        grid_spec=pltpu.PrefetchScalarGridSpec(
            num_scalar_prefetch=0,
            grid=grid,
            in_specs=[
                pl.BlockSpec((tn_eff, L), lambda i: (i, 0)),    # x row tile (streamed)
                pl.BlockSpec((L, D), lambda i: (0, 0)),         # W1 (resident, bf16)
                pl.BlockSpec((1, D), lambda i: (0, 0)),         # b1
                w2_spec,                                        # W2 or W2^T
                pl.BlockSpec((1, C), lambda i: (0, 0)),         # b2
            ],
            out_specs=pl.BlockSpec((tn_eff, C), lambda i: (i, 0)),
        ),
        compiler_params=pltpu.CompilerParams(
            dimension_semantics=("parallel",)),
    )(x_in, w1_bf, b1_f, w2_arg, b2_f)

    a = a_pad[:N] if n_pad != N else a_pad
    # The module returns (attention_scores, input_features) unchanged.
    return a, x


def init_params(key, L, D, C, dtype=jnp.float32):
    """Deterministic init matching nn.Linear's default U(-1/sqrt(fan_in), .)."""
    k1, k2, k3, k4 = jax.random.split(key, 4)
    lim1 = 1.0 / math.sqrt(L)
    lim2 = 1.0 / math.sqrt(D)
    w1 = jax.random.uniform(k1, (L, D), dtype, minval=-lim1, maxval=lim1)
    b1 = jax.random.uniform(k2, (1, D), dtype, minval=-lim1, maxval=lim1)
    w2 = jax.random.uniform(k3, (D, C), dtype, minval=-lim2, maxval=lim2)
    b2 = jax.random.uniform(k4, (1, C), dtype, minval=-lim2, maxval=lim2)
    return w1, b1, w2, b2


# TODO(synk): nn.Dropout(0.25) (only active when dropout=True and training) is
# not implemented; this kernel covers the inference forward path.

if __name__ == "__main__":
    L, D = 1024, 256  # CLAM defaults
    key = jax.random.PRNGKey(0)
    kx, kp = jax.random.split(key)

    # Case 1: default n_classes=1, ragged N -> padding path + VPU second layer.
    N1, C1 = 300, 1
    x1 = jax.random.normal(jax.random.fold_in(kx, 0), (N1, L), dtype=jnp.float32)
    w1, b1, w2, b2 = init_params(jax.random.fold_in(kp, 0), L, D, C1)
    a1, x1_out = attn_net_forward(x1, w1, b1, w2, b2, tn=256)
    jax.block_until_ready((a1, x1_out))
    a1_ref = jnp.tanh(x1 @ w1 + b1) @ w2 + b2
    assert a1.shape == (N1, C1) and x1_out.shape == (N1, L)
    assert jnp.allclose(a1, a1_ref, atol=5e-2, rtol=5e-2), "C=1 path mismatch"
    assert jnp.array_equal(x1_out, x1)

    # Case 2: multi-class head -> MXU second layer.
    N2, C2 = 64, 3
    x2 = jax.random.normal(jax.random.fold_in(kx, 1), (N2, L), dtype=jnp.float32)
    w1b, b1b, w2b, b2b = init_params(jax.random.fold_in(kp, 1), L, D, C2)
    a2, x2_out = attn_net_forward(x2, w1b, b1b, w2b, b2b, tn=512)
    jax.block_until_ready((a2, x2_out))
    a2_ref = jnp.tanh(x2 @ w1b + b1b) @ w2b + b2b
    assert a2.shape == (N2, C2) and x2_out.shape == (N2, L)
    assert jnp.allclose(a2, a2_ref, atol=5e-2, rtol=5e-2), "C>1 path mismatch"
    assert jnp.array_equal(x2_out, x2)

    print("KERNEL_OK")
</pallas_src>

<mosaic_0001>
module attributes {stable_mosaic.version = 11 : i64} {
  func.func @_attn_kernel_vpu(%arg0: i32, %arg1: memref<256x1024xf32, #tpu.memory_space<vmem>>, %arg2: memref<1024x256xbf16, #tpu.memory_space<vmem>>, %arg3: memref<1x256xf32, #tpu.memory_space<vmem>>, %arg4: memref<1x256xf32, #tpu.memory_space<vmem>>, %arg5: memref<1x1xf32, #tpu.memory_space<vmem>>, %arg6: memref<256x1xf32, #tpu.memory_space<vmem>>) attributes {dimension_semantics = [#tpu.dimension_semantics<parallel>], iteration_bounds = array<i64: 2>, scalar_prefetch = 0 : i64, scratch_operands = 0 : i64, tpu.core_type = #tpu.core_type<tc>, window_params = [{transform_indices = @transform_0, window_bounds = array<i64: 256, 1024>}, {pipeline_mode = #tpu.pipeline_mode<synchronous>, transform_indices = @transform_1, window_bounds = array<i64: 1024, 256>}, {pipeline_mode = #tpu.pipeline_mode<synchronous>, transform_indices = @transform_2, window_bounds = array<i64: 1, 256>}, {pipeline_mode = #tpu.pipeline_mode<synchronous>, transform_indices = @transform_3, window_bounds = array<i64: 1, 256>}, {pipeline_mode = #tpu.pipeline_mode<synchronous>, transform_indices = @transform_4, window_bounds = array<i64: 1, 1>}, {transform_indices = @transform_5, window_bounds = array<i64: 256, 1>}]} {
    %c0 = arith.constant 0 : index
    %c0_0 = arith.constant 0 : index
    %0 = vector.load %arg1[%c0, %c0_0] : memref<256x1024xf32, #tpu.memory_space<vmem>>, vector<256x1024xf32>
    %1 = arith.truncf %0 : vector<256x1024xf32> to vector<256x1024xbf16>
    %c0_1 = arith.constant 0 : index
    %c0_2 = arith.constant 0 : index
    %2 = vector.load %arg2[%c0_1, %c0_2] : memref<1024x256xbf16, #tpu.memory_space<vmem>>, vector<1024x256xbf16>
    %cst = arith.constant dense<0.000000e+00> : vector<256x256xf32>
    %3 = tpu.matmul %1, %2, %cst {dimension_numbers = #tpu.dot_dimension_numbers<[1], [0], [0], [1], [0, 0, 1, 1], [], []>} : vector<256x1024xbf16>, vector<1024x256xbf16>, vector<256x256xf32> -> vector<256x256xf32>
    %c0_3 = arith.constant 0 : index
    %c0_4 = arith.constant 0 : index
    %4 = vector.load %arg3[%c0_3, %c0_4] : memref<1x256xf32, #tpu.memory_space<vmem>>, vector<1x256xf32>
    %5 = vector.broadcast %4 : vector<1x256xf32> to vector<256x256xf32>
    %6 = arith.addf %3, %5 : vector<256x256xf32>
    %7 = math.tanh %6 : vector<256x256xf32>
    %c0_5 = arith.constant 0 : index
    %c0_6 = arith.constant 0 : index
    %8 = vector.load %arg4[%c0_5, %c0_6] : memref<1x256xf32, #tpu.memory_space<vmem>>, vector<1x256xf32>
    %9 = vector.broadcast %8 : vector<1x256xf32> to vector<256x256xf32>
    %10 = arith.mulf %7, %9 : vector<256x256xf32>
    %cst_7 = arith.constant dense<0.000000e+00> : vector<256xf32>
    %11 = vector.multi_reduction <add>, %10, %cst_7 [1] : vector<256x256xf32> to vector<256xf32>
    %12 = vector.shape_cast %11 : vector<256xf32> to vector<256x1xf32>
    %c0_8 = arith.constant 0 : index
    %c0_9 = arith.constant 0 : index
    %13 = vector.load %arg5[%c0_8, %c0_9] : memref<1x1xf32, #tpu.memory_space<vmem>>, vector<1x1xf32>
    %14 = vector.broadcast %13 : vector<1x1xf32> to vector<256x1xf32>
    %15 = arith.addf %12, %14 : vector<256x1xf32>
    %c0_10 = arith.constant 0 : index
    %c0_11 = arith.constant 0 : index
    %16 = vector.load %arg6[%c0_10, %c0_11] : memref<256x1xf32, #tpu.memory_space<vmem>>, vector<256x1xf32>
    tpu.vector_store %arg6[%c0_10, %c0_11], %15 {strides = array<i32>} : memref<256x1xf32, #tpu.memory_space<vmem>>, vector<256x1xf32>,
    return
  }
  func.func @transform_0(%arg0: i32) -> (i32, i32) {
    %c0_i32 = arith.constant 0 : i32
    %c0_i32_0 = arith.constant 0 : i32
    return %arg0, %c0_i32 : i32, i32
  }
  func.func @transform_1(%arg0: i32) -> (i32, i32) {
    %c0_i32 = arith.constant 0 : i32
    %c0_i32_0 = arith.constant 0 : i32
    %c0_i32_1 = arith.constant 0 : i32
    return %c0_i32, %c0_i32_0 : i32, i32
  }
  func.func @transform_2(%arg0: i32) -> (i32, i32) {
    %c0_i32 = arith.constant 0 : i32
    %c0_i32_0 = arith.constant 0 : i32
    %c0_i32_1 = arith.constant 0 : i32
    return %c0_i32, %c0_i32_0 : i32, i32
  }
  func.func @transform_3(%arg0: i32) -> (i32, i32) {
    %c0_i32 = arith.constant 0 : i32
    %c0_i32_0 = arith.constant 0 : i32
    %c0_i32_1 = arith.constant 0 : i32
    return %c0_i32, %c0_i32_0 : i32, i32
  }
  func.func @transform_4(%arg0: i32) -> (i32, i32) {
    %c0_i32 = arith.constant 0 : i32
    %c0_i32_0 = arith.constant 0 : i32
    %c0_i32_1 = arith.constant 0 : i32
    return %c0_i32, %c0_i32_0 : i32, i32
  }
  func.func @transform_5(%arg0: i32) -> (i32, i32) {
    %c0_i32 = arith.constant 0 : i32
    %c0_i32_0 = arith.constant 0 : i32
    return %arg0, %c0_i32 : i32, i32
  }
}

</mosaic_0001>

<llo_original>
// kernel: tpu_custom_call.1
$region0: #{tpu_custom_call.1}
  #allocation0 [shape = 'u32[]', space=smem, size = 0x4, offset = 0x4, fixed_abs, tag = 'smem constant byte address 0x4 - core index']
  #allocation1 [shape = 'u32[144,128]{1,0:T(1,128)}', space=vmem, size = 0x12000, scoped, tag = 'internal scratch']
  #allocation2 [shape = 'f32[1,1]{1,0:T(1,128)S(1)}', space=vmem, size = 0x200, scoped, tag = 'scoped memory for tpu_custom_call.1']
  %s0 = inlined_call_operand.hbm [shape: f32[512,1024], index: 0, kind: input, shape index: {}]
  %s1 = inlined_call_operand.hbm [shape: bf16[1024,256], index: 1, kind: input, shape index: {}]
  %s2 = inlined_call_operand.hbm [shape: f32[1,256], index: 2, kind: input, shape index: {}]
  %s3 = inlined_call_operand.hbm [shape: f32[1,256], index: 3, kind: input, shape index: {}]
  %s4 = inlined_call_operand.<no memory space> [shape: f32[1,1], index: 4, kind: input, shape index: {}]
  %s5 = inlined_call_operand.vmem [shape: f32[512,1], index: 5, kind: output, shape index: {}]
  %s6 = sld [smem:[#allocation0]]
  $region69: #{tpu_custom_call.1} parent=0
    _
  %s8 = ssub.s32 1, %s6
  %s9 = scalar_select 0, %s8, %s6
  %v10 = vstv %s4
  %11 = vst [vmem:[#allocation2] sm:$0x1] %v10
  $region1: #{tpu_custom_call.1} parent=0
    #allocation3 [shape = 'u8[2097152]{0}', space=vmem, size = 0x200000, scoped, tag = 'input window, operand 0']
    #allocation4 [shape = 's32[2]{0}', space=sflag, size = 0x8, scoped, tag = 'scoped memory for tpu_custom_call.1']
    #allocation5 [shape = 'u8[524288]{0}', space=vmem, size = 0x80000, scoped, tag = 'input window, operand 1, single buffered']
    #allocation6 [shape = 's32[1]{0}', space=sflag, size = 0x4, scoped, tag = 'scoped memory for tpu_custom_call.1']
    #allocation7 [shape = 'u8[1024]{0}', space=vmem, size = 0x400, scoped, tag = 'input window, operand 2, single buffered']
    #allocation8 [shape = 'u8[1024]{0}', space=vmem, size = 0x400, scoped, tag = 'input window, operand 3, single buffered']
    #allocation9 [shape = 's32[1]{0}', space=sflag, size = 0x4, scoped, tag = 'scoped memory for tpu_custom_call.1']
    %12 = vsyncpa [#allocation4], 0
    %s13 = scalar_lea.sflag [#allocation4], 1
    %14 = vsyncpa %s13, 0
    %15 = vsyncpa [#allocation6], 0
    %16 = vsyncpa [#allocation9], 0
    loop: start=0, step=1, limit=4
    $region2: #{tpu_custom_call.1} parent=1 // loop_pre_header
      _
    $region3: #{tpu_custom_call.1} parent=1 // loop_header
      %s18 = sphi 0, %s22
      %p19 = scmp.ge.s32.totalorder %s18, 4
      %s28 = sphi 0, %s30
      %s31 = sphi 0, %s28
      %s32 = sphi 0, %s31
      %s48 = sphi 0, %s32
      %s52 = sphi 0, %s52
      %s54 = sphi 0, %s52
      %s55 = sphi 0, %s54
      %s69 = sphi 0, %s55
      %s73 = sphi 0, %s73
      %s75 = sphi 0, %s73
      %s76 = sphi 0, %s75
      %s90 = sphi 0, %s76
      %s94 = sphi 0, %s94
      %s96 = sphi 0, %s94
      %s97 = sphi 0, %s96
      %s111 = sphi 0, %s97
      %s115 = sphi 0, %s115
      %s117 = sphi 0, %s115
      %s118 = sphi 0, %s117
      %s132 = sphi 0, %s118
      %s138 = sphi 0, %s140
      %s141 = sphi 0, %s138
      %s142 = sphi 0, %s141
      %s158 = sphi 0, %s142
    $region4: #{tpu_custom_call.1} parent=1 // loop_header_branch
      %21 = sbr.rel (%p19) target = $region8
    $region5: #{tpu_custom_call.1} parent=1 // loop_body
      %s23 = ssub.s32 %s18, 1
      %s24 = ssub.s32 %s18, 2
      %s25 = sadd.s32 %s18, 1
      %s26 = ssub.s32 %s18, %s25
      %p27 = scmp.eq.s32.totalorder %s26, 0
      %s29 = sadd.s32 %s28, 1
      %s30 = scalar_select %p27, %s28, %s29
      %p33 = pneg %p27
      %p34 = scmp.eq.s32.totalorder %s18, 1
      %p35 = por %p33, %p34
      %p36 = scmp.ne.s32.totalorder %s28, %s31
      %p37 = scmp.eq.s32.totalorder %s18, 0
      %p38 = por %p36, %p37
      %p39 = scmp.ne.s32.totalorder %s28, %s31
      %p40 = scmp.eq.s32.totalorder %s23, 1
      %p41 = por %p39, %p40
      %p42 = scmp.ne.s32.totalorder %s31, %s32
      %p43 = scmp.eq.s32.totalorder %s23, 0
      %p44 = por %p42, %p43
      %p45 = scmp.ne.s32.totalorder %s31, %s32
      %p46 = scmp.eq.s32.totalorder %s24, 1
      %p47 = por %p45, %p46
      %p49 = scmp.ne.s32.totalorder %s32, %s48
      %p50 = scmp.eq.s32.totalorder %s24, 0
      %p51 = por %p49, %p50
      %s53 = sadd.s32 %s52, 1
      %p56 = scmp.eq.s32.totalorder %s18, 1
      %p57 = scmp.ne.s32.totalorder %s52, %s54
      %p58 = scmp.eq.s32.totalorder %s18, 0
      %p59 = por %p57, %p58
      %p60 = scmp.ne.s32.totalorder %s52, %s54
      %p61 = scmp.eq.s32.totalorder %s23, 1
      %p62 = por %p60, %p61
      %p63 = scmp.ne.s32.totalorder %s54, %s55
      %p64 = scmp.eq.s32.totalorder %s23, 0
      %p65 = por %p63, %p64
      %p66 = scmp.ne.s32.totalorder %s54, %s55
      %p67 = scmp.eq.s32.totalorder %s24, 1
      %p68 = por %p66, %p67
      %p70 = scmp.ne.s32.totalorder %s55, %s69
      %p71 = scmp.eq.s32.totalorder %s24, 0
      %p72 = por %p70, %p71
      %s74 = sadd.s32 %s73, 1
      %p77 = scmp.eq.s32.totalorder %s18, 1
      %p78 = scmp.ne.s32.totalorder %s73, %s75
      %p79 = scmp.eq.s32.totalorder %s18, 0
      %p80 = por %p78, %p79
      %p81 = scmp.ne.s32.totalorder %s73, %s75
      %p82 = scmp.eq.s32.totalorder %s23, 1
      %p83 = por %p81, %p82
      %p84 = scmp.ne.s32.totalorder %s75, %s76
      %p85 = scmp.eq.s32.totalorder %s23, 0
      %p86 = por %p84, %p85
      %p87 = scmp.ne.s32.totalorder %s75, %s76
      %p88 = scmp.eq.s32.totalorder %s24, 1
      %p89 = por %p87, %p88
      %p91 = scmp.ne.s32.totalorder %s76, %s90
      %p92 = scmp.eq.s32.totalorder %s24, 0
      %p93 = por %p91, %p92
      %s95 = sadd.s32 %s94, 1
      %p98 = scmp.eq.s32.totalorder %s18, 1
      %p99 = scmp.ne.s32.totalorder %s94, %s96
      %p100 = scmp.eq.s32.totalorder %s18, 0
      %p101 = por %p99, %p100
      %p102 = scmp.ne.s32.totalorder %s94, %s96
      %p103 = scmp.eq.s32.totalorder %s23, 1
      %p104 = por %p102, %p103
      %p105 = scmp.ne.s32.totalorder %s96, %s97
      %p106 = scmp.eq.s32.totalorder %s23, 0
      %p107 = por %p105, %p106
      %p108 = scmp.ne.s32.totalorder %s96, %s97
      %p109 = scmp.eq.s32.totalorder %s24, 1
      %p110 = por %p108, %p109
      %p112 = scmp.ne.s32.totalorder %s97, %s111
      %p113 = scmp.eq.s32.totalorder %s24, 0
      %p114 = por %p112, %p113
      %s116 = sadd.s32 %s115, 1
      %p119 = scmp.eq.s32.totalorder %s18, 1
      %p120 = scmp.ne.s32.totalorder %s115, %s117
      %p121 = scmp.eq.s32.totalorder %s18, 0
      %p122 = por %p120, %p121
      %p123 = scmp.ne.s32.totalorder %s115, %s117
      %p124 = scmp.eq.s32.totalorder %s23, 1
      %p125 = por %p123, %p124
      %p126 = scmp.ne.s32.totalorder %s117, %s118
      %p127 = scmp.eq.s32.totalorder %s23, 0
      %p128 = por %p126, %p127
      %p129 = scmp.ne.s32.totalorder %s117, %s118
      %p130 = scmp.eq.s32.totalorder %s24, 1
      %p131 = por %p129, %p130
      %p133 = scmp.ne.s32.totalorder %s118, %s132
      %p134 = scmp.eq.s32.totalorder %s24, 0
      %p135 = por %p133, %p134
      %s136 = ssub.s32 %s18, %s25
      %p137 = scmp.eq.s32.totalorder %s136, 0
      %s139 = sadd.s32 %s138, 1
      %s140 = scalar_select %p137, %s138, %s139
      %p143 = pneg %p137
      %p144 = scmp.eq.s32.totalorder %s18, 1
      %p145 = por %p143, %p144
      %p146 = scmp.ne.s32.totalorder %s138, %s141
      %p147 = scmp.eq.s32.totalorder %s18, 0
      %p148 = por %p146, %p147
      %p149 = scmp.ne.s32.totalorder %s138, %s141
      %p150 = scmp.eq.s32.totalorder %s23, 1
      %p151 = por %p149, %p150
      %p152 = scmp.ne.s32.totalorder %s141, %s142
      %p153 = scmp.eq.s32.totalorder %s23, 0
      %p154 = por %p152, %p153
      %p155 = scmp.ne.s32.totalorder %s141, %s142
      %p156 = scmp.eq.s32.totalorder %s24, 1
      %p157 = por %p155, %p156
      %p159 = scmp.ne.s32.totalorder %s142, %s158
      %p160 = scmp.eq.s32.totalorder %s24, 0
      %p161 = por %p159, %p160
      %p162 = scmp.le.s32.totalorder 1, %s18
      %p163 = scmp.lt.s32.totalorder %s18, 3
      %p164 = pnand %p162, %p163
      %p165 = pneg %p164
      // Predicated region
      $region9: #{tpu_custom_call.1} parent=5 // pred_check
        _
      $region10: #{tpu_custom_call.1} parent=5 // pred_check_branch
        %167 = sbr.rel (%p164) target = $region12
      $region11: #{tpu_custom_call.1} parent=5 // pred_region
        %s168 = ssub.s32 %s18, 1
        // Predicated region
        $region13: #{tpu_custom_call.1} parent=11 // pred_check
          %p169 = pneg %p65
        $region14: #{tpu_custom_call.1} parent=11 // pred_check_branch
          %171 = sbr.rel (%p169) target = $region16
        $region15: #{tpu_custom_call.1} parent=11 // pred_region
          %s173 = ssub.s32 16384, 16384
          %174 = vsyncadd [#allocation6], %s173
          %s175 = sshll.u32 [#allocation5], 4
          %s176 = int_to_ptr.vmem [resolvable:$true] %s175
          %181 = dma.hbm_to_vmem [thread:$0]  %s1, 16384, %s176, [#allocation6], 128, 128, 8
        $region16: #{tpu_custom_call.1} parent=11 // pred_fallthru
          _
        // Predicated region
        $region17: #{tpu_custom_call.1} parent=11 // pred_check
          %p182 = pneg %p86
        $region18: #{tpu_custom_call.1} parent=11 // pred_check_branch
          %184 = sbr.rel (%p182) target = $region20
        $region19: #{tpu_custom_call.1} parent=11 // pred_region
          %s186 = ssub.s32 32, 32
          %187 = vsyncadd [#allocation6], %s186
          %s189 = sshll.u32 [#allocation7], 4
          %s190 = int_to_ptr.vmem [resolvable:$true] %s189
          %192 = dma.hbm_to_vmem [thread:$0]  %s2, 32, %s190, [#allocation6]
        $region20: #{tpu_custom_call.1} parent=11 // pred_fallthru
          _
        // Predicated region
        $region21: #{tpu_custom_call.1} parent=11 // pred_check
          %p193 = pneg %p107
        $region22: #{tpu_custom_call.1} parent=11 // pred_check_branch
          %195 = sbr.rel (%p193) target = $region24
        $region23: #{tpu_custom_call.1} parent=11 // pred_region
          %s197 = ssub.s32 32, 32
          %198 = vsyncadd [#allocation9], %s197
          %s200 = sshll.u32 [#allocation8], 4
          %s201 = int_to_ptr.vmem [resolvable:$true] %s200
          %203 = dma.hbm_to_vmem [thread:$0]  %s3, 32, %s201, [#allocation9]
        $region24: #{tpu_custom_call.1} parent=11 // pred_fallthru
          _
        // Predicated region
        $region25: #{tpu_custom_call.1} parent=11 // pred_check
          %p204 = pneg %p128
        $region26: #{tpu_custom_call.1} parent=11 // pred_check_branch
          %206 = sbr.rel (%p204) target = $region28
        $region27: #{tpu_custom_call.1} parent=11 // pred_region
          _
        $region28: #{tpu_custom_call.1} parent=11 // pred_fallthru
          _
      $region12: #{tpu_custom_call.1} parent=5 // pred_fallthru
        _
      %p207 = scmp.lt.s32.totalorder %s18, 2
      // Predicated region
      $region29: #{tpu_custom_call.1} parent=5 // pred_check
        %p208 = pneg %p207
      $region30: #{tpu_custom_call.1} parent=5 // pred_check_branch
        %210 = sbr.rel (%p208) target = $region32
      $region31: #{tpu_custom_call.1} parent=5 // pred_region
        // Predicated region
        $region33: #{tpu_custom_call.1} parent=31 // pred_check
          %p211 = pneg %p38
        $region34: #{tpu_custom_call.1} parent=31 // pred_check_branch
          %213 = sbr.rel (%p211) target = $region36
        $region35: #{tpu_custom_call.1} parent=31 // pred_region
          %s214 = sand.u32 %s28, 1
          %s215 = scalar_lea.sflag [#allocation4], %s214
          %s216 = sand.u32 %s28, 1
          %s217 = smul.addr %s216, 2048
          %s218 = scalar_lea.vmem [#allocation3], %s217
          %s219 = smul.u32 32, %s18
          %s221 = ssub.s32 32768, 32768
          %222 = vsyncadd %s215, %s221
          %s223 = smul.addr %s219, 8
          %s224 = smul.addr %s223, 128
          %s225 = scalar_lea.hbm %s0, %s224
          %s226 = sshll.u32 %s218, 4
          %s227 = int_to_ptr.vmem [resolvable:$true] %s226
          %232 = dma.hbm_to_vmem [thread:$0]  %s225, 32768, %s227, %s215, 1024, 1024, 64
        $region36: #{tpu_custom_call.1} parent=31 // pred_fallthru
          _
      $region32: #{tpu_custom_call.1} parent=5 // pred_fallthru
        _
      %p233 = scmp.le.s32.totalorder 1, %s18
      %p234 = scmp.lt.s32.totalorder %s18, 3
      %p235 = pnand %p233, %p234
      %p236 = pneg %p235
      // Predicated region
      $region37: #{tpu_custom_call.1} parent=5 // pred_check
        _
      $region38: #{tpu_custom_call.1} parent=5 // pred_check_branch
        %238 = sbr.rel (%p235) target = $region40
      $region39: #{tpu_custom_call.1} parent=5 // pred_region
        %s239 = ssub.s32 %s18, 1
        %s240 = sand.u32 %s31, 1
        %s241 = scalar_lea.sflag [#allocation4], %s240
        %s242 = sand.u32 %s31, 1
        %s243 = smul.addr %s242, 2048
        %s244 = scalar_lea.vmem [#allocation3], %s243
        // Predicated region
        $region41: #{tpu_custom_call.1} parent=39 // pred_check
          %p245 = pneg %p44
        $region42: #{tpu_custom_call.1} parent=39 // pred_check_branch
          %247 = sbr.rel (%p245) target = $region44
        $region43: #{tpu_custom_call.1} parent=39 // pred_region
          %248 = dma.done %s241, 32768
        $region44: #{tpu_custom_call.1} parent=39 // pred_fallthru
          _
        // Predicated region
        $region45: #{tpu_custom_call.1} parent=39 // pred_check
          %p249 = pneg %p65
        $region46: #{tpu_custom_call.1} parent=39 // pred_check_branch
          %251 = sbr.rel (%p249) target = $region48
        $region47: #{tpu_custom_call.1} parent=39 // pred_region
          %252 = dma.done [#allocation6], 16384
        $region48: #{tpu_custom_call.1} parent=39 // pred_fallthru
          _
        // Predicated region
        $region49: #{tpu_custom_call.1} parent=39 // pred_check
          %p253 = pneg %p86
        $region50: #{tpu_custom_call.1} parent=39 // pred_check_branch
          %255 = sbr.rel (%p253) target = $region52
        $region51: #{tpu_custom_call.1} parent=39 // pred_region
          %256 = dma.done [#allocation6], 32
        $region52: #{tpu_custom_call.1} parent=39 // pred_fallthru
          _
        // Predicated region
        $region53: #{tpu_custom_call.1} parent=39 // pred_check
          %p257 = pneg %p107
        $region54: #{tpu_custom_call.1} parent=39 // pred_check_branch
          %259 = sbr.rel (%p257) target = $region56
        $region55: #{tpu_custom_call.1} parent=39 // pred_region
          %260 = dma.done [#allocation9], 32
        $region56: #{tpu_custom_call.1} parent=39 // pred_fallthru
          _
        %s261 = sand.u32 %s31, 1
        %s262 = scalar_lea.sflag [#allocation4], %s261
        %s263 = sand.u32 %s31, 1
        %s264 = smul.addr %s263, 2048
        %s265 = scalar_lea.vmem [#allocation3], %s264
        %p266 = pneg %p44
        %p267 = pneg %p41
        %p268 = pneg %p65
        %p269 = pneg %p62
        %p270 = pneg %p86
        %p271 = pneg %p83
        %p272 = pneg %p107
        %p273 = pneg %p104
        %p274 = pneg %p128
        %p275 = pneg %p125
        %p276 = pneg %p154
        %p277 = pneg %p151
        %s278 = smul.u32 32, %s23
        %p279 = scmp.lt.s32.totalorder %s278, 63
        %s280 = scalar_select %p279, %s278, 63
        %s281 = smul.addr %s280, 8
        %s282 = scalar_lea.vmem %s5, %s281
        %s283 = smul.u32 32, %s23
        %s284 = smul.u32 32, %s23
        %p285 = scmp.lt.s32.totalorder %s284, 63
        %s286 = scalar_select %p285, %s284, 63
        %s287 = smul.addr %s286, 8
        %s288 = scalar_lea.vmem %s5, %s287
        %s289 = smul.u32 32, %s23
        %v290 = vld [vmem:[%s244] sm:$0xff]
        %v291 = vld [vmem:[%s244 + $0x8] sm:$0xff]
        %v292 = vld [vmem:[%s244 + $0x10] sm:$0xff]
        %v293 = vld [vmem:[%s244 + $0x18] sm:$0xff]
        %v294 = vld [vmem:[%s244 + $0x20] sm:$0xff]
        %v295 = vld [vmem:[%s244 + $0x28] sm:$0xff]
        %v296 = vld [vmem:[%s244 + $0x30] sm:$0xff]
        %v297 = vld [vmem:[%s244 + $0x38] sm:$0xff]
        %v298 = vld [vmem:[%s244 + $0x40] sm:$0xff]
        %v299 = vld [vmem:[%s244 + $0x48] sm:$0xff]
        %v300 = vld [vmem:[%s244 + $0x50] sm:$0xff]
        %v301 = vld [vmem:[%s244 + $0x58] sm:$0xff]
        %v302 = vld [vmem:[%s244 + $0x60] sm:$0xff]
        %v303 = vld [vmem:[%s244 + $0x68] sm:$0xff]
        %v304 = vld [vmem:[%s244 + $0x70] sm:$0xff]
        %v305 = vld [vmem:[%s244 + $0x78] sm:$0xff]
        %v306 = vld [vmem:[%s244 + $0x80] sm:$0xff]
        %v307 = vld [vmem:[%s244 + $0x88] sm:$0xff]
        %v308 = vld [vmem:[%s244 + $0x90] sm:$0xff]
        %v309 = vld [vmem:[%s244 + $0x98] sm:$0xff]
        %v310 = vld [vmem:[%s244 + $0xa0] sm:$0xff]
        %v311 = vld [vmem:[%s244 + $0xa8] sm:$0xff]
        %v312 = vld [vmem:[%s244 + $0xb0] sm:$0xff]
        %v313 = vld [vmem:[%s244 + $0xb8] sm:$0xff]
        %v314 = vld [vmem:[%s244 + $0xc0] sm:$0xff]
        %v315 = vld [vmem:[%s244 + $0xc8] sm:$0xff]
        %v316 = vld [vmem:[%s244 + $0xd0] sm:$0xff]
        %v317 = vld [vmem:[%s244 + $0xd8] sm:$0xff]
        %v318 = vld [vmem:[%s244 + $0xe0] sm:$0xff]
        %v319 = vld [vmem:[%s244 + $0xe8] sm:$0xff]
        %v320 = vld [vmem:[%s244 + $0xf0] sm:$0xff]
        %v321 = vld [vmem:[%s244 + $0xf8] sm:$0xff]
        %v322 = vld [vmem:[%s244 + $0x100] sm:$0xff]
        %v323 = vld [vmem:[%s244 + $0x108] sm:$0xff]
        %v324 = vld [vmem:[%s244 + $0x110] sm:$0xff]
        %v325 = vld [vmem:[%s244 + $0x118] sm:$0xff]
        %v326 = vld [vmem:[%s244 + $0x120] sm:$0xff]
        %v327 = vld [vmem:[%s244 + $0x128] sm:$0xff]
        %v328 = vld [vmem:[%s244 + $0x130] sm:$0xff]
        %v329 = vld [vmem:[%s244 + $0x138] sm:$0xff]
        %v330 = vld [vmem:[%s244 + $0x140] sm:$0xff]
        %v331 = vld [vmem:[%s244 + $0x148] sm:$0xff]
        %v332 = vld [vmem:[%s244 + $0x150] sm:$0xff]
        %v333 = vld [vmem:[%s244 + $0x158] sm:$0xff]
        %v334 = vld [vmem:[%s244 + $0x160] sm:$0xff]
        %v335 = vld [vmem:[%s244 + $0x168] sm:$0xff]
        %v336 = vld [vmem:[%s244 + $0x170] sm:$0xff]
        %v337 = vld [vmem:[%s244 + $0x178] sm:$0xff]
        %v338 = vld [vmem:[%s244 + $0x180] sm:$0xff]
        %v339 = vld [vmem:[%s244 + $0x188] sm:$0xff]
        %v340 = vld [vmem:[%s244 + $0x190] sm:$0xff]
        %v341 = vld [vmem:[%s244 + $0x198] sm:$0xff]
        %v342 = vld [vmem:[%s244 + $0x1a0] sm:$0xff]
        %v343 = vld [vmem:[%s244 + $0x1a8] sm:$0xff]
        %v344 = vld [vmem:[%s244 + $0x1b0] sm:$0xff]
        %v345 = vld [vmem:[%s244 + $0x1b8] sm:$0xff]
        %v346 = vld [vmem:[%s244 + $0x1c0] sm:$0xff]
        %v347 = vld [vmem:[%s244 + $0x1c8] sm:$0xff]
        %v348 = vld [vmem:[%s244 + $0x1d0] sm:$0xff]
        %v349 = vld [vmem:[%s244 + $0x1d8] sm:$0xff]
        %v350 = vld [vmem:[%s244 + $0x1e0] sm:$0xff]
        %v351 = vld [vmem:[%s244 + $0x1e8] sm:$0xff]
        %v352 = vld [vmem:[%s244 + $0x1f0] sm:$0xff]
        %v353 = vld [vmem:[%s244 + $0x1f8] sm:$0xff]
        %v354 = vld [vmem:[%s244 + $0x200] sm:$0xff]
        %v355 = vld [vmem:[%s244 + $0x208] sm:$0xff]
        %v356 = vld [vmem:[%s244 + $0x210] sm:$0xff]
        %v357 = vld [vmem:[%s244 + $0x218] sm:$0xff]
        %v358 = vld [vmem:[%s244 + $0x220] sm:$0xff]
        %v359 = vld [vmem:[%s244 + $0x228] sm:$0xff]
        %v360 = vld [vmem:[%s244 + $0x230] sm:$0xff]
        %v361 = vld [vmem:[%s244 + $0x238] sm:$0xff]
        %v362 = vld [vmem:[%s244 + $0x240] sm:$0xff]
        %v363 = vld [vmem:[%s244 + $0x248] sm:$0xff]
        %v364 = vld [vmem:[%s244 + $0x250] sm:$0xff]
        %v365 = vld [vmem:[%s244 + $0x258] sm:$0xff]
        %v366 = vld [vmem:[%s244 + $0x260] sm:$0xff]
        %v367 = vld [vmem:[%s244 + $0x268] sm:$0xff]
        %v368 = vld [vmem:[%s244 + $0x270] sm:$0xff]
        %v369 = vld [vmem:[%s244 + $0x278] sm:$0xff]
        %v370 = vld [vmem:[%s244 + $0x280] sm:$0xff]
        %v371 = vld [vmem:[%s244 + $0x288] sm:$0xff]
        %v372 = vld [vmem:[%s244 + $0x290] sm:$0xff]
        %v373 = vld [vmem:[%s244 + $0x298] sm:$0xff]
        %v374 = vld [vmem:[%s244 + $0x2a0] sm:$0xff]
        %v375 = vld [vmem:[%s244 + $0x2a8] sm:$0xff]
        %v376 = vld [vmem:[%s244 + $0x2b0] sm:$0xff]
        %v377 = vld [vmem:[%s244 + $0x2b8] sm:$0xff]
        %v378 = vld [vmem:[%s244 + $0x2c0] sm:$0xff]
        %v379 = vld [vmem:[%s244 + $0x2c8] sm:$0xff]
        %v380 = vld [vmem:[%s244 + $0x2d0] sm:$0xff]
        %v381 = vld [vmem:[%s244 + $0x2d8] sm:$0xff]
        %v382 = vld [vmem:[%s244 + $0x2e0] sm:$0xff]
        %v383 = vld [vmem:[%s244 + $0x2e8] sm:$0xff]
        %v384 = vld [vmem:[%s244 + $0x2f0] sm:$0xff]
        %v385 = vld [vmem:[%s244 + $0x2f8] sm:$0xff]
        %v386 = vld [vmem:[%s244 + $0x300] sm:$0xff]
        %v387 = vld [vmem:[%s244 + $0x308] sm:$0xff]
        %v388 = vld [vmem:[%s244 + $0x310] sm:$0xff]
        %v389 = vld [vmem:[%s244 + $0x318] sm:$0xff]
        %v390 = vld [vmem:[%s244 + $0x320] sm:$0xff]
        %v391 = vld [vmem:[%s244 + $0x328] sm:$0xff]
        %v392 = vld [vmem:[%s244 + $0x330] sm:$0xff]
        %v393 = vld [vmem:[%s244 + $0x338] sm:$0xff]
        %v394 = vld [vmem:[%s244 + $0x340] sm:$0xff]
        %v395 = vld [vmem:[%s244 + $0x348] sm:$0xff]
        %v396 = vld [vmem:[%s244 + $0x350] sm:$0xff]
        %v397 = vld [vmem:[%s244 + $0x358] sm:$0xff]
        %v398 = vld [vmem:[%s244 + $0x360] sm:$0xff]
        %v399 = vld [vmem:[%s244 + $0x368] sm:$0xff]
        %v400 = vld [vmem:[%s244 + $0x370] sm:$0xff]
        %v401 = vld [vmem:[%s244 + $0x378] sm:$0xff]
        %v402 = vld [vmem:[%s244 + $0x380] sm:$0xff]
        %v403 = vld [vmem:[%s244 + $0x388] sm:$0xff]
        %v404 = vld [vmem:[%s244 + $0x390] sm:$0xff]
        %v405 = vld [vmem:[%s244 + $0x398] sm:$0xff]
        %v406 = vld [vmem:[%s244 + $0x3a0] sm:$0xff]
        %v407 = vld [vmem:[%s244 + $0x3a8] sm:$0xff]
        %v408 = vld [vmem:[%s244 + $0x3b0] sm:$0xff]
        %v409 = vld [vmem:[%s244 + $0x3b8] sm:$0xff]
        %v410 = vld [vmem:[%s244 + $0x3c0] sm:$0xff]
        %v411 = vld [vmem:[%s244 + $0x3c8] sm:$0xff]
        %v412 = vld [vmem:[%s244 + $0x3d0] sm:$0xff]
        %v413 = vld [vmem:[%s244 + $0x3d8] sm:$0xff]
        %v414 = vld [vmem:[%s244 + $0x3e0] sm:$0xff]
        %v415 = vld [vmem:[%s244 + $0x3e8] sm:$0xff]
        %v416 = vld [vmem:[%s244 + $0x3f0] sm:$0xff]
        %v417 = vld [vmem:[%s244 + $0x3f8] sm:$0xff]
        %v418 = vld [vmem:[%s244 + $0x400] sm:$0xff]
        %v419 = vld [vmem:[%s244 + $0x408] sm:$0xff]
        %v420 = vld [vmem:[%s244 + $0x410] sm:$0xff]
        %v421 = vld [vmem:[%s244 + $0x418] sm:$0xff]
        %v422 = vld [vmem:[%s244 + $0x420] sm:$0xff]
        %v423 = vld [vmem:[%s244 + $0x428] sm:$0xff]
        %v424 = vld [vmem:[%s244 + $0x430] sm:$0xff]
        %v425 = vld [vmem:[%s244 + $0x438] sm:$0xff]
        %v426 = vld [vmem:[%s244 + $0x440] sm:$0xff]
        %v427 = vld [vmem:[%s244 + $0x448] sm:$0xff]
        %v428 = vld [vmem:[%s244 + $0x450] sm:$0xff]
        %v429 = vld [vmem:[%s244 + $0x458] sm:$0xff]
        %v430 = vld [vmem:[%s244 + $0x460] sm:$0xff]
        %v431 = vld [vmem:[%s244 + $0x468] sm:$0xff]
        %v432 = vld [vmem:[%s244 + $0x470] sm:$0xff]
        %v433 = vld [vmem:[%s244 + $0x478] sm:$0xff]
        %v434 = vld [vmem:[%s244 + $0x480] sm:$0xff]
        %v435 = vld [vmem:[%s244 + $0x488] sm:$0xff]
        %v436 = vld [vmem:[%s244 + $0x490] sm:$0xff]
        %v437 = vld [vmem:[%s244 + $0x498] sm:$0xff]
        %v438 = vld [vmem:[%s244 + $0x4a0] sm:$0xff]
        %v439 = vld [vmem:[%s244 + $0x4a8] sm:$0xff]
        %v440 = vld [vmem:[%s244 + $0x4b0] sm:$0xff]
        %v441 = vld [vmem:[%s244 + $0x4b8] sm:$0xff]
        %v442 = vld [vmem:[%s244 + $0x4c0] sm:$0xff]
        %v443 = vld [vmem:[%s244 + $0x4c8] sm:$0xff]
        %v444 = vld [vmem:[%s244 + $0x4d0] sm:$0xff]
        %v445 = vld [vmem:[%s244 + $0x4d8] sm:$0xff]
        %v446 = vld [vmem:[%s244 + $0x4e0] sm:$0xff]
        %v447 = vld [vmem:[%s244 + $0x4e8] sm:$0xff]
        %v448 = vld [vmem:[%s244 + $0x4f0] sm:$0xff]
        %v449 = vld [vmem:[%s244 + $0x4f8] sm:$0xff]
        %v450 = vld [vmem:[%s244 + $0x500] sm:$0xff]
        %v451 = vld [vmem:[%s244 + $0x508] sm:$0xff]
        %v452 = vld [vmem:[%s244 + $0x510] sm:$0xff]
        %v453 = vld [vmem:[%s244 + $0x518] sm:$0xff]
        %v454 = vld [vmem:[%s244 + $0x520] sm:$0xff]
        %v455 = vld [vmem:[%s244 + $0x528] sm:$0xff]
        %v456 = vld [vmem:[%s244 + $0x530] sm:$0xff]
        %v457 = vld [vmem:[%s244 + $0x538] sm:$0xff]
        %v458 = vld [vmem:[%s244 + $0x540] sm:$0xff]
        %v459 = vld [vmem:[%s244 + $0x548] sm:$0xff]
        %v460 = vld [vmem:[%s244 + $0x550] sm:$0xff]
        %v461 = vld [vmem:[%s244 + $0x558] sm:$0xff]
        %v462 = vld [vmem:[%s244 + $0x560] sm:$0xff]
        %v463 = vld [vmem:[%s244 + $0x568] sm:$0xff]
        %v464 = vld [vmem:[%s244 + $0x570] sm:$0xff]
        %v465 = vld [vmem:[%s244 + $0x578] sm:$0xff]
        %v466 = vld [vmem:[%s244 + $0x580] sm:$0xff]
        %v467 = vld [vmem:[%s244 + $0x588] sm:$0xff]
        %v468 = vld [vmem:[%s244 + $0x590] sm:$0xff]
        %v469 = vld [vmem:[%s244 + $0x598] sm:$0xff]
        %v470 = vld [vmem:[%s244 + $0x5a0] sm:$0xff]
        %v471 = vld [vmem:[%s244 + $0x5a8] sm:$0xff]
        %v472 = vld [vmem:[%s244 + $0x5b0] sm:$0xff]
        %v473 = vld [vmem:[%s244 + $0x5b8] sm:$0xff]
        %v474 = vld [vmem:[%s244 + $0x5c0] sm:$0xff]
        %v475 = vld [vmem:[%s244 + $0x5c8] sm:$0xff]
        %v476 = vld [vmem:[%s244 + $0x5d0] sm:$0xff]
        %v477 = vld [vmem:[%s244 + $0x5d8] sm:$0xff]
        %v478 = vld [vmem:[%s244 + $0x5e0] sm:$0xff]
        %v479 = vld [vmem:[%s244 + $0x5e8] sm:$0xff]
        %v480 = vld [vmem:[%s244 + $0x5f0] sm:$0xff]
        %v481 = vld [vmem:[%s244 + $0x5f8] sm:$0xff]
        %v482 = vld [vmem:[%s244 + $0x600] sm:$0xff]
        %v483 = vld [vmem:[%s244 + $0x608] sm:$0xff]
        %v484 = vld [vmem:[%s244 + $0x610] sm:$0xff]
        %v485 = vld [vmem:[%s244 + $0x618] sm:$0xff]
        %v486 = vld [vmem:[%s244 + $0x620] sm:$0xff]
        %v487 = vld [vmem:[%s244 + $0x628] sm:$0xff]
        %v488 = vld [vmem:[%s244 + $0x630] sm:$0xff]
        %v489 = vld [vmem:[%s244 + $0x638] sm:$0xff]
        %v490 = vld [vmem:[%s244 + $0x640] sm:$0xff]
        %v491 = vld [vmem:[%s244 + $0x648] sm:$0xff]
        %v492 = vld [vmem:[%s244 + $0x650] sm:$0xff]
        %v493 = vld [vmem:[%s244 + $0x658] sm:$0xff]
        %v494 = vld [vmem:[%s244 + $0x660] sm:$0xff]
        %v495 = vld [vmem:[%s244 + $0x668] sm:$0xff]
        %v496 = vld [vmem:[%s244 + $0x670] sm:$0xff]
        %v497 = vld [vmem:[%s244 + $0x678] sm:$0xff]
        %v498 = vld [vmem:[%s244 + $0x680] sm:$0xff]
        %v499 = vld [vmem:[%s244 + $0x688] sm:$0xff]
        %v500 = vld [vmem:[%s244 + $0x690] sm:$0xff]
        %v501 = vld [vmem:[%s244 + $0x698] sm:$0xff]
        %v502 = vld [vmem:[%s244 + $0x6a0] sm:$0xff]
        %v503 = vld [vmem:[%s244 + $0x6a8] sm:$0xff]
        %v504 = vld [vmem:[%s244 + $0x6b0] sm:$0xff]
        %v505 = vld [vmem:[%s244 + $0x6b8] sm:$0xff]
        %v506 = vld [vmem:[%s244 + $0x6c0] sm:$0xff]
        %v507 = vld [vmem:[%s244 + $0x6c8] sm:$0xff]
        %v508 = vld [vmem:[%s244 + $0x6d0] sm:$0xff]
        %v509 = vld [vmem:[%s244 + $0x6d8] sm:$0xff]
        %v510 = vld [vmem:[%s244 + $0x6e0] sm:$0xff]
        %v511 = vld [vmem:[%s244 + $0x6e8] sm:$0xff]
        %v512 = vld [vmem:[%s244 + $0x6f0] sm:$0xff]
        %v513 = vld [vmem:[%s244 + $0x6f8] sm:$0xff]
        %v514 = vld [vmem:[%s244 + $0x700] sm:$0xff]
        %v515 = vld [vmem:[%s244 + $0x708] sm:$0xff]
        %v516 = vld [vmem:[%s244 + $0x710] sm:$0xff]
        %v517 = vld [vmem:[%s244 + $0x718] sm:$0xff]
        %v518 = vld [vmem:[%s244 + $0x720] sm:$0xff]
        %v519 = vld [vmem:[%s244 + $0x728] sm:$0xff]
        %v520 = vld [vmem:[%s244 + $0x730] sm:$0xff]
        %v521 = vld [vmem:[%s244 + $0x738] sm:$0xff]
        %v522 = vld [vmem:[%s244 + $0x740] sm:$0xff]
        %v523 = vld [vmem:[%s244 + $0x748] sm:$0xff]
        %v524 = vld [vmem:[%s244 + $0x750] sm:$0xff]
        %v525 = vld [vmem:[%s244 + $0x758] sm:$0xff]
        %v526 = vld [vmem:[%s244 + $0x760] sm:$0xff]
        %v527 = vld [vmem:[%s244 + $0x768] sm:$0xff]
        %v528 = vld [vmem:[%s244 + $0x770] sm:$0xff]
        %v529 = vld [vmem:[%s244 + $0x778] sm:$0xff]
        %v530 = vld [vmem:[%s244 + $0x780] sm:$0xff]
        %v531 = vld [vmem:[%s244 + $0x788] sm:$0xff]
        %v532 = vld [vmem:[%s244 + $0x790] sm:$0xff]
        %v533 = vld [vmem:[%s244 + $0x798] sm:$0xff]
        %v534 = vld [vmem:[%s244 + $0x7a0] sm:$0xff]
        %v535 = vld [vmem:[%s244 + $0x7a8] sm:$0xff]
        %v536 = vld [vmem:[%s244 + $0x7b0] sm:$0xff]
        %v537 = vld [vmem:[%s244 + $0x7b8] sm:$0xff]
        %v538 = vld [vmem:[%s244 + $0x7c0] sm:$0xff]
        %v539 = vld [vmem:[%s244 + $0x7c8] sm:$0xff]
        %v540 = vld [vmem:[%s244 + $0x7d0] sm:$0xff]
        %v541 = vld [vmem:[%s244 + $0x7d8] sm:$0xff]
        %v542 = vld [vmem:[%s244 + $0x7e0] sm:$0xff]
        %v543 = vld [vmem:[%s244 + $0x7e8] sm:$0xff]
        %v544 = vld [vmem:[%s244 + $0x7f0] sm:$0xff]
        %v545 = vld [vmem:[%s244 + $0x7f8] sm:$0xff]
        %v546 = vpack.c.bf16 %v298, %v290
        %v547 = vpack.c.bf16 %v299, %v291
        %v548 = vpack.c.bf16 %v300, %v292
        %v549 = vpack.c.bf16 %v301, %v293
        %v550 = vpack.c.bf16 %v302, %v294
        %v551 = vpack.c.bf16 %v303, %v295
        %v552 = vpack.c.bf16 %v304, %v296
        %v553 = vpack.c.bf16 %v305, %v297
        %v554 = vpack.c.bf16 %v314, %v306
        %v555 = vpack.c.bf16 %v315, %v307
        %v556 = vpack.c.bf16 %v316, %v308
        %v557 = vpack.c.bf16 %v317, %v309
        %v558 = vpack.c.bf16 %v318, %v310
        %v559 = vpack.c.bf16 %v319, %v311
        %v560 = vpack.c.bf16 %v320, %v312
        %v561 = vpack.c.bf16 %v321, %v313
        %v562 = vpack.c.bf16 %v330, %v322
        %v563 = vpack.c.bf16 %v331, %v323
        %v564 = vpack.c.bf16 %v332, %v324
        %v565 = vpack.c.bf16 %v333, %v325
        %v566 = vpack.c.bf16 %v334, %v326
        %v567 = vpack.c.bf16 %v335, %v327
        %v568 = vpack.c.bf16 %v336, %v328
        %v569 = vpack.c.bf16 %v337, %v329
        %v570 = vpack.c.bf16 %v346, %v338
        %v571 = vpack.c.bf16 %v347, %v339
        %v572 = vpack.c.bf16 %v348, %v340
        %v573 = vpack.c.bf16 %v349, %v341
        %v574 = vpack.c.bf16 %v350, %v342
        %v575 = vpack.c.bf16 %v351, %v343
        %v576 = vpack.c.bf16 %v352, %v344
        %v577 = vpack.c.bf16 %v353, %v345
        %v578 = vpack.c.bf16 %v362, %v354
        %v579 = vpack.c.bf16 %v363, %v355
        %v580 = vpack.c.bf16 %v364, %v356
        %v581 = vpack.c.bf16 %v365, %v357
        %v582 = vpack.c.bf16 %v366, %v358
        %v583 = vpack.c.bf16 %v367, %v359
        %v584 = vpack.c.bf16 %v368, %v360
        %v585 = vpack.c.bf16 %v369, %v361
        %v586 = vpack.c.bf16 %v378, %v370
        %v587 = vpack.c.bf16 %v379, %v371
        %v588 = vpack.c.bf16 %v380, %v372
        %v589 = vpack.c.bf16 %v381, %v373
        %v590 = vpack.c.bf16 %v382, %v374
        %v591 = vpack.c.bf16 %v383, %v375
        %v592 = vpack.c.bf16 %v384, %v376
        %v593 = vpack.c.bf16 %v385, %v377
        %v594 = vpack.c.bf16 %v394, %v386
        %v595 = vpack.c.bf16 %v395, %v387
        %v596 = vpack.c.bf16 %v396, %v388
        %v597 = vpack.c.bf16 %v397, %v389
        %v598 = vpack.c.bf16 %v398, %v390
        %v599 = vpack.c.bf16 %v399, %v391
        %v600 = vpack.c.bf16 %v400, %v392
        %v601 = vpack.c.bf16 %v401, %v393
        %v602 = vpack.c.bf16 %v410, %v402
        %v603 = vpack.c.bf16 %v411, %v403
        %v604 = vpack.c.bf16 %v412, %v404
        %v605 = vpack.c.bf16 %v413, %v405
        %v606 = vpack.c.bf16 %v414, %v406
        %v607 = vpack.c.bf16 %v415, %v407
        %v608 = vpack.c.bf16 %v416, %v408
        %v609 = vpack.c.bf16 %v417, %v409
        %v610 = vpack.c.bf16 %v426, %v418
        %v611 = vpack.c.bf16 %v427, %v419
        %v612 = vpack.c.bf16 %v428, %v420
        %v613 = vpack.c.bf16 %v429, %v421
        %v614 = vpack.c.bf16 %v430, %v422
        %v615 = vpack.c.bf16 %v431, %v423
        %v616 = vpack.c.bf16 %v432, %v424
        %v617 = vpack.c.bf16 %v433, %v425
        %v618 = vpack.c.bf16 %v442, %v434
        %v619 = vpack.c.bf16 %v443, %v435
        %v620 = vpack.c.bf16 %v444, %v436
        %v621 = vpack.c.bf16 %v445, %v437
        %v622 = vpack.c.bf16 %v446, %v438
        %v623 = vpack.c.bf16 %v447, %v439
        %v624 = vpack.c.bf16 %v448, %v440
        %v625 = vpack.c.bf16 %v449, %v441
        %v626 = vpack.c.bf16 %v458, %v450
        %v627 = vpack.c.bf16 %v459, %v451
        %v628 = vpack.c.bf16 %v460, %v452
        %v629 = vpack.c.bf16 %v461, %v453
        %v630 = vpack.c.bf16 %v462, %v454
        %v631 = vpack.c.bf16 %v463, %v455
        %v632 = vpack.c.bf16 %v464, %v456
        %v633 = vpack.c.bf16 %v465, %v457
        %v634 = vpack.c.bf16 %v474, %v466
        %v635 = vpack.c.bf16 %v475, %v467
        %v636 = vpack.c.bf16 %v476, %v468
        %v637 = vpack.c.bf16 %v477, %v469
        %v638 = vpack.c.bf16 %v478, %v470
        %v639 = vpack.c.bf16 %v479, %v471
        %v640 = vpack.c.bf16 %v480, %v472
        %v641 = vpack.c.bf16 %v481, %v473
        %v642 = vpack.c.bf16 %v490, %v482
        %v643 = vpack.c.bf16 %v491, %v483
        %v644 = vpack.c.bf16 %v492, %v484
        %v645 = vpack.c.bf16 %v493, %v485
        %v646 = vpack.c.bf16 %v494, %v486
        %v647 = vpack.c.bf16 %v495, %v487
        %v648 = vpack.c.bf16 %v496, %v488
        %v649 = vpack.c.bf16 %v497, %v489
        %v650 = vpack.c.bf16 %v506, %v498
        %v651 = vpack.c.bf16 %v507, %v499
        %v652 = vpack.c.bf16 %v508, %v500
        %v653 = vpack.c.bf16 %v509, %v501
        %v654 = vpack.c.bf16 %v510, %v502
        %v655 = vpack.c.bf16 %v511, %v503
        %v656 = vpack.c.bf16 %v512, %v504
        %v657 = vpack.c.bf16 %v513, %v505
        %v658 = vpack.c.bf16 %v522, %v514
        %v659 = vpack.c.bf16 %v523, %v515
        %v660 = vpack.c.bf16 %v524, %v516
        %v661 = vpack.c.bf16 %v525, %v517
        %v662 = vpack.c.bf16 %v526, %v518
        %v663 = vpack.c.bf16 %v527, %v519
        %v664 = vpack.c.bf16 %v528, %v520
        %v665 = vpack.c.bf16 %v529, %v521
        %v666 = vpack.c.bf16 %v538, %v530
        %v667 = vpack.c.bf16 %v539, %v531
        %v668 = vpack.c.bf16 %v540, %v532
        %v669 = vpack.c.bf16 %v541, %v533
        %v670 = vpack.c.bf16 %v542, %v534
        %v671 = vpack.c.bf16 %v543, %v535
        %v672 = vpack.c.bf16 %v544, %v536
        %v673 = vpack.c.bf16 %v545, %v537
        %v674 = vld [vmem:[#allocation5] sm:$0xff]
        %v675 = vld [vmem:[#allocation5 + $0x8] sm:$0xff]
        %v676 = vld [vmem:[#allocation5 + $0x10] sm:$0xff]
        %v677 = vld [vmem:[#allocation5 + $0x18] sm:$0xff]
        %v678 = vld [vmem:[#allocation5 + $0x20] sm:$0xff]
        %v679 = vld [vmem:[#allocation5 + $0x28] sm:$0xff]
        %v680 = vld [vmem:[#allocation5 + $0x30] sm:$0xff]
        %v681 = vld [vmem:[#allocation5 + $0x38] sm:$0xff]
        %v682 = vld [vmem:[#allocation5 + $0x40] sm:$0xff]
        %v683 = vld [vmem:[#allocation5 + $0x48] sm:$0xff]
        %v684 = vld [vmem:[#allocation5 + $0x50] sm:$0xff]
        %v685 = vld [vmem:[#allocation5 + $0x58] sm:$0xff]
        %v686 = vld [vmem:[#allocation5 + $0x60] sm:$0xff]
        %v687 = vld [vmem:[#allocation5 + $0x68] sm:$0xff]
        %v688 = vld [vmem:[#allocation5 + $0x70] sm:$0xff]
        %v689 = vld [vmem:[#allocation5 + $0x78] sm:$0xff]
        %v690 = vld [vmem:[#allocation5 + $0x80] sm:$0xff]
        %v691 = vld [vmem:[#allocation5 + $0x88] sm:$0xff]
        %v692 = vld [vmem:[#allocation5 + $0x90] sm:$0xff]
        %v693 = vld [vmem:[#allocation5 + $0x98] sm:$0xff]
        %v694 = vld [vmem:[#allocation5 + $0xa0] sm:$0xff]
        %v695 = vld [vmem:[#allocation5 + $0xa8] sm:$0xff]
        %v696 = vld [vmem:[#allocation5 + $0xb0] sm:$0xff]
        %v697 = vld [vmem:[#allocation5 + $0xb8] sm:$0xff]
        %v698 = vld [vmem:[#allocation5 + $0xc0] sm:$0xff]
        %v699 = vld [vmem:[#allocation5 + $0xc8] sm:$0xff]
        %v700 = vld [vmem:[#allocation5 + $0xd0] sm:$0xff]
        %v701 = vld [vmem:[#allocation5 + $0xd8] sm:$0xff]
        %v702 = vld [vmem:[#allocation5 + $0xe0] sm:$0xff]
        %v703 = vld [vmem:[#allocation5 + $0xe8] sm:$0xff]
        %v704 = vld [vmem:[#allocation5 + $0xf0] sm:$0xff]
        %v705 = vld [vmem:[#allocation5 + $0xf8] sm:$0xff]
        %v706 = vld [vmem:[#allocation5 + $0x100] sm:$0xff]
        %v707 = vld [vmem:[#allocation5 + $0x108] sm:$0xff]
        %v708 = vld [vmem:[#allocation5 + $0x110] sm:$0xff]
        %v709 = vld [vmem:[#allocation5 + $0x118] sm:$0xff]
        %v710 = vld [vmem:[#allocation5 + $0x120] sm:$0xff]
        %v711 = vld [vmem:[#allocation5 + $0x128] sm:$0xff]
        %v712 = vld [vmem:[#allocation5 + $0x130] sm:$0xff]
        %v713 = vld [vmem:[#allocation5 + $0x138] sm:$0xff]
        %v714 = vld [vmem:[#allocation5 + $0x140] sm:$0xff]
        %v715 = vld [vmem:[#allocation5 + $0x148] sm:$0xff]
        %v716 = vld [vmem:[#allocation5 + $0x150] sm:$0xff]
        %v717 = vld [vmem:[#allocation5 + $0x158] sm:$0xff]
        %v718 = vld [vmem:[#allocation5 + $0x160] sm:$0xff]
        %v719 = vld [vmem:[#allocation5 + $0x168] sm:$0xff]
        %v720 = vld [vmem:[#allocation5 + $0x170] sm:$0xff]
        %v721 = vld [vmem:[#allocation5 + $0x178] sm:$0xff]
        %v722 = vld [vmem:[#allocation5 + $0x180] sm:$0xff]
        %v723 = vld [vmem:[#allocation5 + $0x188] sm:$0xff]
        %v724 = vld [vmem:[#allocation5 + $0x190] sm:$0xff]
        %v725 = vld [vmem:[#allocation5 + $0x198] sm:$0xff]
        %v726 = vld [vmem:[#allocation5 + $0x1a0] sm:$0xff]
        %v727 = vld [vmem:[#allocation5 + $0x1a8] sm:$0xff]
        %v728 = vld [vmem:[#allocation5 + $0x1b0] sm:$0xff]
        %v729 = vld [vmem:[#allocation5 + $0x1b8] sm:$0xff]
        %v730 = vld [vmem:[#allocation5 + $0x1c0] sm:$0xff]
        %v731 = vld [vmem:[#allocation5 + $0x1c8] sm:$0xff]
        %v732 = vld [vmem:[#allocation5 + $0x1d0] sm:$0xff]
        %v733 = vld [vmem:[#allocation5 + $0x1d8] sm:$0xff]
        %v734 = vld [vmem:[#allocation5 + $0x1e0] sm:$0xff]
        %v735 = vld [vmem:[#allocation5 + $0x1e8] sm:$0xff]
        %v736 = vld [vmem:[#allocation5 + $0x1f0] sm:$0xff]
        %v737 = vld [vmem:[#allocation5 + $0x1f8] sm:$0xff]
        %v738 = vld [vmem:[#allocation5 + $0x200] sm:$0xff]
        %v739 = vld [vmem:[#allocation5 + $0x208] sm:$0xff]
        %v740 = vld [vmem:[#allocation5 + $0x210] sm:$0xff]
        %v741 = vld [vmem:[#allocation5 + $0x218] sm:$0xff]
        %v742 = vld [vmem:[#allocation5 + $0x220] sm:$0xff]
        %v743 = vld [vmem:[#allocation5 + $0x228] sm:$0xff]
        %v744 = vld [vmem:[#allocation5 + $0x230] sm:$0xff]
        %v745 = vld [vmem:[#allocation5 + $0x238] sm:$0xff]
        %v746 = vld [vmem:[#allocation5 + $0x240] sm:$0xff]
        %v747 = vld [vmem:[#allocation5 + $0x248] sm:$0xff]
        %v748 = vld [vmem:[#allocation5 + $0x250] sm:$0xff]
        %v749 = vld [vmem:[#allocation5 + $0x258] sm:$0xff]
        %v750 = vld [vmem:[#allocation5 + $0x260] sm:$0xff]
        %v751 = vld [vmem:[#allocation5 + $0x268] sm:$0xff]
        %v752 = vld [vmem:[#allocation5 + $0x270] sm:$0xff]
        %v753 = vld [vmem:[#allocation5 + $0x278] sm:$0xff]
        %v754 = vld [vmem:[#allocation5 + $0x280] sm:$0xff]
        %v755 = vld [vmem:[#allocation5 + $0x288] sm:$0xff]
        %v756 = vld [vmem:[#allocation5 + $0x290] sm:$0xff]
        %v757 = vld [vmem:[#allocation5 + $0x298] sm:$0xff]
        %v758 = vld [vmem:[#allocation5 + $0x2a0] sm:$0xff]
        %v759 = vld [vmem:[#allocation5 + $0x2a8] sm:$0xff]
        %v760 = vld [vmem:[#allocation5 + $0x2b0] sm:$0xff]
        %v761 = vld [vmem:[#allocation5 + $0x2b8] sm:$0xff]
        %v762 = vld [vmem:[#allocation5 + $0x2c0] sm:$0xff]
        %v763 = vld [vmem:[#allocation5 + $0x2c8] sm:$0xff]
        %v764 = vld [vmem:[#allocation5 + $0x2d0] sm:$0xff]
        %v765 = vld [vmem:[#allocation5 + $0x2d8] sm:$0xff]
        %v766 = vld [vmem:[#allocation5 + $0x2e0] sm:$0xff]
        %v767 = vld [vmem:[#allocation5 + $0x2e8] sm:$0xff]
        %v768 = vld [vmem:[#allocation5 + $0x2f0] sm:$0xff]
        %v769 = vld [vmem:[#allocation5 + $0x2f8] sm:$0xff]
        %v770 = vld [vmem:[#allocation5 + $0x300] sm:$0xff]
        %v771 = vld [vmem:[#allocation5 + $0x308] sm:$0xff]
        %v772 = vld [vmem:[#allocation5 + $0x310] sm:$0xff]
        %v773 = vld [vmem:[#allocation5 + $0x318] sm:$0xff]
        %v774 = vld [vmem:[#allocation5 + $0x320] sm:$0xff]
        %v775 = vld [vmem:[#allocation5 + $0x328] sm:$0xff]
        %v776 = vld [vmem:[#allocation5 + $0x330] sm:$0xff]
        %v777 = vld [vmem:[#allocation5 + $0x338] sm:$0xff]
        %v778 = vld [vmem:[#allocation5 + $0x340] sm:$0xff]
        %v779 = vld [vmem:[#allocation5 + $0x348] sm:$0xff]
        %v780 = vld [vmem:[#allocation5 + $0x350] sm:$0xff]
        %v781 = vld [vmem:[#allocation5 + $0x358] sm:$0xff]
        %v782 = vld [vmem:[#allocation5 + $0x360] sm:$0xff]
        %v783 = vld [vmem:[#allocation5 + $0x368] sm:$0xff]
        %v784 = vld [vmem:[#allocation5 + $0x370] sm:$0xff]
        %v785 = vld [vmem:[#allocation5 + $0x378] sm:$0xff]
        %v786 = vld [vmem:[#allocation5 + $0x380] sm:$0xff]
        %v787 = vld [vmem:[#allocation5 + $0x388] sm:$0xff]
        %v788 = vld [vmem:[#allocation5 + $0x390] sm:$0xff]
        %v789 = vld [vmem:[#allocation5 + $0x398] sm:$0xff]
        %v790 = vld [vmem:[#allocation5 + $0x3a0] sm:$0xff]
        %v791 = vld [vmem:[#allocation5 + $0x3a8] sm:$0xff]
        %v792 = vld [vmem:[#allocation5 + $0x3b0] sm:$0xff]
        %v793 = vld [vmem:[#allocation5 + $0x3b8] sm:$0xff]
        %v794 = vld [vmem:[#allocation5 + $0x3c0] sm:$0xff]
        %v795 = vld [vmem:[#allocation5 + $0x3c8] sm:$0xff]
        %v796 = vld [vmem:[#allocation5 + $0x3d0] sm:$0xff]
        %v797 = vld [vmem:[#allocation5 + $0x3d8] sm:$0xff]
        %v798 = vld [vmem:[#allocation5 + $0x3e0] sm:$0xff]
        %v799 = vld [vmem:[#allocation5 + $0x3e8] sm:$0xff]
        %v800 = vld [vmem:[#allocation5 + $0x3f0] sm:$0xff]
        %v801 = vld [vmem:[#allocation5 + $0x3f8] sm:$0xff]
        %v802 = vld [vmem:[#allocation7] sm:$0x3]
        %v804 = vlaneseq
        %v805 = vshrl.u32 %v804, 7
        %v806 = vsub.s32 0, %v805
        %v807 = vrot.slane %v802, %v806
        %v808 = vlaneseq
        %v809 = vshrl.u32 %v808, 7
        %v810 = vsub.s32 1, %v809
        %v811 = vrot.slane %v802, %v810
        %v942 = vunpack.c.l.b16 %v674
        %v943 = vunpack.c.h.b16 %v674
        %v944 = vunpack.c.l.b16 %v675
        %v945 = vunpack.c.h.b16 %v675
        %v946 = vunpack.c.l.b16 %v676
        %v947 = vunpack.c.h.b16 %v676
        %v948 = vunpack.c.l.b16 %v677
        %v949 = vunpack.c.h.b16 %v677
        %v950 = vunpack.c.l.b16 %v678
        %v951 = vunpack.c.h.b16 %v678
        %v952 = vunpack.c.l.b16 %v679
        %v953 = vunpack.c.h.b16 %v679
        %v954 = vunpack.c.l.b16 %v680
        %v955 = vunpack.c.h.b16 %v680
        %v956 = vunpack.c.l.b16 %v681
        %v957 = vunpack.c.h.b16 %v681
        %v958 = vunpack.c.l.b16 %v682
        %v959 = vunpack.c.h.b16 %v682
        %v960 = vunpack.c.l.b16 %v683
        %v961 = vunpack.c.h.b16 %v683
        %v962 = vunpack.c.l.b16 %v684
        %v963 = vunpack.c.h.b16 %v684
        %v964 = vunpack.c.l.b16 %v685
        %v965 = vunpack.c.h.b16 %v685
        %v966 = vunpack.c.l.b16 %v686
        %v967 = vunpack.c.h.b16 %v686
        %v968 = vunpack.c.l.b16 %v687
        %v969 = vunpack.c.h.b16 %v687
        %v970 = vunpack.c.l.b16 %v688
        %v971 = vunpack.c.h.b16 %v688
        %v972 = vunpack.c.l.b16 %v689
        %v973 = vunpack.c.h.b16 %v689
        %v974 = vunpack.c.l.b16 %v690
        %v975 = vunpack.c.h.b16 %v690
        %v976 = vunpack.c.l.b16 %v691
        %v977 = vunpack.c.h.b16 %v691
        %v978 = vunpack.c.l.b16 %v692
        %v979 = vunpack.c.h.b16 %v692
        %v980 = vunpack.c.l.b16 %v693
        %v981 = vunpack.c.h.b16 %v693
        %v982 = vunpack.c.l.b16 %v694
        %v983 = vunpack.c.h.b16 %v694
        %v984 = vunpack.c.l.b16 %v695
        %v985 = vunpack.c.h.b16 %v695
        %v986 = vunpack.c.l.b16 %v696
        %v987 = vunpack.c.h.b16 %v696
        %v988 = vunpack.c.l.b16 %v697
        %v989 = vunpack.c.h.b16 %v697
        %v990 = vunpack.c.l.b16 %v698
        %v991 = vunpack.c.h.b16 %v698
        %v992 = vunpack.c.l.b16 %v699
        %v993 = vunpack.c.h.b16 %v699
        %v994 = vunpack.c.l.b16 %v700
        %v995 = vunpack.c.h.b16 %v700
        %v996 = vunpack.c.l.b16 %v701
        %v997 = vunpack.c.h.b16 %v701
        %v998 = vunpack.c.l.b16 %v702
        %v999 = vunpack.c.h.b16 %v702
        %v1000 = vunpack.c.l.b16 %v703
        %v1001 = vunpack.c.h.b16 %v703
        %v1002 = vunpack.c.l.b16 %v704
        %v1003 = vunpack.c.h.b16 %v704
        %v1004 = vunpack.c.l.b16 %v705
        %v1005 = vunpack.c.h.b16 %v705
        %v1006 = vunpack.c.l.b16 %v706
        %v1007 = vunpack.c.h.b16 %v706
        %v1008 = vunpack.c.l.b16 %v707
        %v1009 = vunpack.c.h.b16 %v707
        %v1010 = vunpack.c.l.b16 %v708
        %v1011 = vunpack.c.h.b16 %v708
        %v1012 = vunpack.c.l.b16 %v709
        %v1013 = vunpack.c.h.b16 %v709
        %v1014 = vunpack.c.l.b16 %v710
        %v1015 = vunpack.c.h.b16 %v710
        %v1016 = vunpack.c.l.b16 %v711
        %v1017 = vunpack.c.h.b16 %v711
        %v1018 = vunpack.c.l.b16 %v712
        %v1019 = vunpack.c.h.b16 %v712
        %v1020 = vunpack.c.l.b16 %v713
        %v1021 = vunpack.c.h.b16 %v713
        %v1022 = vunpack.c.l.b16 %v714
        %v1023 = vunpack.c.h.b16 %v714
        %v1024 = vunpack.c.l.b16 %v715
        %v1025 = vunpack.c.h.b16 %v715
        %v1026 = vunpack.c.l.b16 %v716
        %v1027 = vunpack.c.h.b16 %v716
        %v1028 = vunpack.c.l.b16 %v717
        %v1029 = vunpack.c.h.b16 %v717
        %v1030 = vunpack.c.l.b16 %v718
        %v1031 = vunpack.c.h.b16 %v718
        %v1032 = vunpack.c.l.b16 %v719
        %v1033 = vunpack.c.h.b16 %v719
        %v1034 = vunpack.c.l.b16 %v720
        %v1035 = vunpack.c.h.b16 %v720
        %v1036 = vunpack.c.l.b16 %v721
        %v1037 = vunpack.c.h.b16 %v721
        %v1038 = vunpack.c.l.b16 %v722
        %v1039 = vunpack.c.h.b16 %v722
        %v1040 = vunpack.c.l.b16 %v723
        %v1041 = vunpack.c.h.b16 %v723
        %v1042 = vunpack.c.l.b16 %v724
        %v1043 = vunpack.c.h.b16 %v724
        %v1044 = vunpack.c.l.b16 %v725
        %v1045 = vunpack.c.h.b16 %v725
        %v1046 = vunpack.c.l.b16 %v726
        %v1047 = vunpack.c.h.b16 %v726
        %v1048 = vunpack.c.l.b16 %v727
        %v1049 = vunpack.c.h.b16 %v727
        %v1050 = vunpack.c.l.b16 %v728
        %v1051 = vunpack.c.h.b16 %v728
        %v1052 = vunpack.c.l.b16 %v729
        %v1053 = vunpack.c.h.b16 %v729
        %v1054 = vunpack.c.l.b16 %v730
        %v1055 = vunpack.c.h.b16 %v730
        %v1056 = vunpack.c.l.b16 %v731
        %v1057 = vunpack.c.h.b16 %v731
        %v1058 = vunpack.c.l.b16 %v732
        %v1059 = vunpack.c.h.b16 %v732
        %v1060 = vunpack.c.l.b16 %v733
        %v1061 = vunpack.c.h.b16 %v733
        %v1062 = vunpack.c.l.b16 %v734
        %v1063 = vunpack.c.h.b16 %v734
        %v1064 = vunpack.c.l.b16 %v735
        %v1065 = vunpack.c.h.b16 %v735
        %v1066 = vunpack.c.l.b16 %v736
        %v1067 = vunpack.c.h.b16 %v736
        %v1068 = vunpack.c.l.b16 %v737
        %v1069 = vunpack.c.h.b16 %v737
        %v1070 = vunpack.c.l.b16 %v738
        %v1071 = vunpack.c.h.b16 %v738
        %v1072 = vunpack.c.l.b16 %v739
        %v1073 = vunpack.c.h.b16 %v739
        %v1074 = vunpack.c.l.b16 %v740
        %v1075 = vunpack.c.h.b16 %v740
        %v1076 = vunpack.c.l.b16 %v741
        %v1077 = vunpack.c.h.b16 %v741
        %v1078 = vunpack.c.l.b16 %v742
        %v1079 = vunpack.c.h.b16 %v742
        %v1080 = vunpack.c.l.b16 %v743
        %v1081 = vunpack.c.h.b16 %v743
        %v1082 = vunpack.c.l.b16 %v744
        %v1083 = vunpack.c.h.b16 %v744
        %v1084 = vunpack.c.l.b16 %v745
        %v1085 = vunpack.c.h.b16 %v745
        %v1086 = vunpack.c.l.b16 %v746
        %v1087 = vunpack.c.h.b16 %v746
        %v1088 = vunpack.c.l.b16 %v747
        %v1089 = vunpack.c.h.b16 %v747
        %v1090 = vunpack.c.l.b16 %v748
        %v1091 = vunpack.c.h.b16 %v748
        %v1092 = vunpack.c.l.b16 %v749
        %v1093 = vunpack.c.h.b16 %v749
        %v1094 = vunpack.c.l.b16 %v750
        %v1095 = vunpack.c.h.b16 %v750
        %v1096 = vunpack.c.l.b16 %v751
        %v1097 = vunpack.c.h.b16 %v751
        %v1098 = vunpack.c.l.b16 %v752
        %v1099 = vunpack.c.h.b16 %v752
        %v1100 = vunpack.c.l.b16 %v753
        %v1101 = vunpack.c.h.b16 %v753
        %v1102 = vunpack.c.l.b16 %v754
        %v1103 = vunpack.c.h.b16 %v754
        %v1104 = vunpack.c.l.b16 %v755
        %v1105 = vunpack.c.h.b16 %v755
        %v1106 = vunpack.c.l.b16 %v756
        %v1107 = vunpack.c.h.b16 %v756
        %v1108 = vunpack.c.l.b16 %v757
        %v1109 = vunpack.c.h.b16 %v757
        %v1110 = vunpack.c.l.b16 %v758
        %v1111 = vunpack.c.h.b16 %v758
        %v1112 = vunpack.c.l.b16 %v759
        %v1113 = vunpack.c.h.b16 %v759
        %v1114 = vunpack.c.l.b16 %v760
        %v1115 = vunpack.c.h.b16 %v760
        %v1116 = vunpack.c.l.b16 %v761
        %v1117 = vunpack.c.h.b16 %v761
        %v1118 = vunpack.c.l.b16 %v762
        %v1119 = vunpack.c.h.b16 %v762
        %v1120 = vunpack.c.l.b16 %v763
        %v1121 = vunpack.c.h.b16 %v763
        %v1122 = vunpack.c.l.b16 %v764
        %v1123 = vunpack.c.h.b16 %v764
        %v1124 = vunpack.c.l.b16 %v765
        %v1125 = vunpack.c.h.b16 %v765
        %v1126 = vunpack.c.l.b16 %v766
        %v1127 = vunpack.c.h.b16 %v766
        %v1128 = vunpack.c.l.b16 %v767
        %v1129 = vunpack.c.h.b16 %v767
        %v1130 = vunpack.c.l.b16 %v768
        %v1131 = vunpack.c.h.b16 %v768
        %v1132 = vunpack.c.l.b16 %v769
        %v1133 = vunpack.c.h.b16 %v769
        %v1134 = vunpack.c.l.b16 %v770
        %v1135 = vunpack.c.h.b16 %v770
        %v1136 = vunpack.c.l.b16 %v771
        %v1137 = vunpack.c.h.b16 %v771
        %v1138 = vunpack.c.l.b16 %v772
        %v1139 = vunpack.c.h.b16 %v772
        %v1140 = vunpack.c.l.b16 %v773
        %v1141 = vunpack.c.h.b16 %v773
        %v1142 = vunpack.c.l.b16 %v774
        %v1143 = vunpack.c.h.b16 %v774
        %v1144 = vunpack.c.l.b16 %v775
        %v1145 = vunpack.c.h.b16 %v775
        %v1146 = vunpack.c.l.b16 %v776
        %v1147 = vunpack.c.h.b16 %v776
        %v1148 = vunpack.c.l.b16 %v777
        %v1149 = vunpack.c.h.b16 %v777
        %v1150 = vunpack.c.l.b16 %v778
        %v1151 = vunpack.c.h.b16 %v778
        %v1152 = vunpack.c.l.b16 %v779
        %v1153 = vunpack.c.h.b16 %v779
        %v1154 = vunpack.c.l.b16 %v780
        %v1155 = vunpack.c.h.b16 %v780
        %v1156 = vunpack.c.l.b16 %v781
        %v1157 = vunpack.c.h.b16 %v781
        %v1158 = vunpack.c.l.b16 %v782
        %v1159 = vunpack.c.h.b16 %v782
        %v1160 = vunpack.c.l.b16 %v783
        %v1161 = vunpack.c.h.b16 %v783
        %v1162 = vunpack.c.l.b16 %v784
        %v1163 = vunpack.c.h.b16 %v784
        %v1164 = vunpack.c.l.b16 %v785
        %v1165 = vunpack.c.h.b16 %v785
        %v1166 = vunpack.c.l.b16 %v786
        %v1167 = vunpack.c.h.b16 %v786
        %v1168 = vunpack.c.l.b16 %v787
        %v1169 = vunpack.c.h.b16 %v787
        %v1170 = vunpack.c.l.b16 %v788
        %v1171 = vunpack.c.h.b16 %v788
        %v1172 = vunpack.c.l.b16 %v789
        %v1173 = vunpack.c.h.b16 %v789
        %v1174 = vunpack.c.l.b16 %v790
        %v1175 = vunpack.c.h.b16 %v790
        %v1176 = vunpack.c.l.b16 %v791
        %v1177 = vunpack.c.h.b16 %v791
        %v1178 = vunpack.c.l.b16 %v792
        %v1179 = vunpack.c.h.b16 %v792
        %v1180 = vunpack.c.l.b16 %v793
        %v1181 = vunpack.c.h.b16 %v793
        %v1182 = vunpack.c.l.b16 %v794
        %v1183 = vunpack.c.h.b16 %v794
        %v1184 = vunpack.c.l.b16 %v795
        %v1185 = vunpack.c.h.b16 %v795
        %v1186 = vunpack.c.l.b16 %v796
        %v1187 = vunpack.c.h.b16 %v796
        %v1188 = vunpack.c.l.b16 %v797
        %v1189 = vunpack.c.h.b16 %v797
        %v1190 = vunpack.c.l.b16 %v798
        %v1191 = vunpack.c.h.b16 %v798
        %v1192 = vunpack.c.l.b16 %v799
        %v1193 = vunpack.c.h.b16 %v799
        %v1194 = vunpack.c.l.b16 %v800
        %v1195 = vunpack.c.h.b16 %v800
        %v1196 = vunpack.c.l.b16 %v801
        %v1197 = vunpack.c.h.b16 %v801
        %v1198 = vpack.c.b16 %v944, %v942
        %v1199 = vpack.c.b16 %v945, %v943
        %v1200 = vpack.c.b16 %v948, %v946
        %v1201 = vpack.c.b16 %v949, %v947
        %v1202 = vpack.c.b16 %v952, %v950
        %v1203 = vpack.c.b16 %v953, %v951
        %v1204 = vpack.c.b16 %v956, %v954
        %v1205 = vpack.c.b16 %v957, %v955
        %v1206 = vpack.c.b16 %v960, %v958
        %v1207 = vpack.c.b16 %v961, %v959
        %v1208 = vpack.c.b16 %v964, %v962
        %v1209 = vpack.c.b16 %v965, %v963
        %v1210 = vpack.c.b16 %v968, %v966
        %v1211 = vpack.c.b16 %v969, %v967
        %v1212 = vpack.c.b16 %v972, %v970
        %v1213 = vpack.c.b16 %v973, %v971
        %v1214 = vpack.c.b16 %v976, %v974
        %v1215 = vpack.c.b16 %v977, %v975
        %v1216 = vpack.c.b16 %v980, %v978
        %v1217 = vpack.c.b16 %v981, %v979
        %v1218 = vpack.c.b16 %v984, %v982
        %v1219 = vpack.c.b16 %v985, %v983
        %v1220 = vpack.c.b16 %v988, %v986
        %v1221 = vpack.c.b16 %v989, %v987
        %v1222 = vpack.c.b16 %v992, %v990
        %v1223 = vpack.c.b16 %v993, %v991
        %v1224 = vpack.c.b16 %v996, %v994
        %v1225 = vpack.c.b16 %v997, %v995
        %v1226 = vpack.c.b16 %v1000, %v998
        %v1227 = vpack.c.b16 %v1001, %v999
        %v1228 = vpack.c.b16 %v1004, %v1002
        %v1229 = vpack.c.b16 %v1005, %v1003
        %v1230 = vpack.c.b16 %v1008, %v1006
        %v1231 = vpack.c.b16 %v1009, %v1007
        %v1232 = vpack.c.b16 %v1012, %v1010
        %v1233 = vpack.c.b16 %v1013, %v1011
        %v1234 = vpack.c.b16 %v1016, %v1014
        %v1235 = vpack.c.b16 %v1017, %v1015
        %v1236 = vpack.c.b16 %v1020, %v1018
        %v1237 = vpack.c.b16 %v1021, %v1019
        %v1238 = vpack.c.b16 %v1024, %v1022
        %v1239 = vpack.c.b16 %v1025, %v1023
        %v1240 = vpack.c.b16 %v1028, %v1026
        %v1241 = vpack.c.b16 %v1029, %v1027
        %v1242 = vpack.c.b16 %v1032, %v1030
        %v1243 = vpack.c.b16 %v1033, %v1031
        %v1244 = vpack.c.b16 %v1036, %v1034
        %v1245 = vpack.c.b16 %v1037, %v1035
        %v1246 = vpack.c.b16 %v1040, %v1038
        %v1247 = vpack.c.b16 %v1041, %v1039
        %v1248 = vpack.c.b16 %v1044, %v1042
        %v1249 = vpack.c.b16 %v1045, %v1043
        %v1250 = vpack.c.b16 %v1048, %v1046
        %v1251 = vpack.c.b16 %v1049, %v1047
        %v1252 = vpack.c.b16 %v1052, %v1050
        %v1253 = vpack.c.b16 %v1053, %v1051
        %v1254 = vpack.c.b16 %v1056, %v1054
        %v1255 = vpack.c.b16 %v1057, %v1055
        %v1256 = vpack.c.b16 %v1060, %v1058
        %v1257 = vpack.c.b16 %v1061, %v1059
        %v1258 = vpack.c.b16 %v1064, %v1062
        %v1259 = vpack.c.b16 %v1065, %v1063
        %v1260 = vpack.c.b16 %v1068, %v1066
        %v1261 = vpack.c.b16 %v1069, %v1067
        %v1262 = vpack.c.b16 %v1072, %v1070
        %v1263 = vpack.c.b16 %v1073, %v1071
        %v1264 = vpack.c.b16 %v1076, %v1074
        %v1265 = vpack.c.b16 %v1077, %v1075
        %v1266 = vpack.c.b16 %v1080, %v1078
        %v1267 = vpack.c.b16 %v1081, %v1079
        %v1268 = vpack.c.b16 %v1084, %v1082
        %v1269 = vpack.c.b16 %v1085, %v1083
        %v1270 = vpack.c.b16 %v1088, %v1086
        %v1271 = vpack.c.b16 %v1089, %v1087
        %v1272 = vpack.c.b16 %v1092, %v1090
        %v1273 = vpack.c.b16 %v1093, %v1091
        %v1274 = vpack.c.b16 %v1096, %v1094
        %v1275 = vpack.c.b16 %v1097, %v1095
        %v1276 = vpack.c.b16 %v1100, %v1098
        %v1277 = vpack.c.b16 %v1101, %v1099
        %v1278 = vpack.c.b16 %v1104, %v1102
        %v1279 = vpack.c.b16 %v1105, %v1103
        %v1280 = vpack.c.b16 %v1108, %v1106
        %v1281 = vpack.c.b16 %v1109, %v1107
        %v1282 = vpack.c.b16 %v1112, %v1110
        %v1283 = vpack.c.b16 %v1113, %v1111
        %v1284 = vpack.c.b16 %v1116, %v1114
        %v1285 = vpack.c.b16 %v1117, %v1115
        %v1286 = vpack.c.b16 %v1120, %v1118
        %v1287 = vpack.c.b16 %v1121, %v1119
        %v1288 = vpack.c.b16 %v1124, %v1122
        %v1289 = vpack.c.b16 %v1125, %v1123
        %v1290 = vpack.c.b16 %v1128, %v1126
        %v1291 = vpack.c.b16 %v1129, %v1127
        %v1292 = vpack.c.b16 %v1132, %v1130
        %v1293 = vpack.c.b16 %v1133, %v1131
        %v1294 = vpack.c.b16 %v1136, %v1134
        %v1295 = vpack.c.b16 %v1137, %v1135
        %v1296 = vpack.c.b16 %v1140, %v1138
        %v1297 = vpack.c.b16 %v1141, %v1139
        %v1298 = vpack.c.b16 %v1144, %v1142
        %v1299 = vpack.c.b16 %v1145, %v1143
        %v1300 = vpack.c.b16 %v1148, %v1146
        %v1301 = vpack.c.b16 %v1149, %v1147
        %v1302 = vpack.c.b16 %v1152, %v1150
        %v1303 = vpack.c.b16 %v1153, %v1151
        %v1304 = vpack.c.b16 %v1156, %v1154
        %v1305 = vpack.c.b16 %v1157, %v1155
        %v1306 = vpack.c.b16 %v1160, %v1158
        %v1307 = vpack.c.b16 %v1161, %v1159
        %v1308 = vpack.c.b16 %v1164, %v1162
        %v1309 = vpack.c.b16 %v1165, %v1163
        %v1310 = vpack.c.b16 %v1168, %v1166
        %v1311 = vpack.c.b16 %v1169, %v1167
        %v1312 = vpack.c.b16 %v1172, %v1170
        %v1313 = vpack.c.b16 %v1173, %v1171
        %v1314 = vpack.c.b16 %v1176, %v1174
        %v1315 = vpack.c.b16 %v1177, %v1175
        %v1316 = vpack.c.b16 %v1180, %v1178
        %v1317 = vpack.c.b16 %v1181, %v1179
        %v1318 = vpack.c.b16 %v1184, %v1182
        %v1319 = vpack.c.b16 %v1185, %v1183
        %v1320 = vpack.c.b16 %v1188, %v1186
        %v1321 = vpack.c.b16 %v1189, %v1187
        %v1322 = vpack.c.b16 %v1192, %v1190
        %v1323 = vpack.c.b16 %v1193, %v1191
        %v1324 = vpack.c.b16 %v1196, %v1194
        %v1325 = vpack.c.b16 %v1197, %v1195
        %1454 = vmatprep.subr.bf16.mxu0 %v1199
        %1455 = vmatpush1.bf16.msra.mxu0 %v1198
        %1456 = vmatprep.subr.bf16.mxu0 %v1201
        %1457 = vmatpush1.bf16.msra.mxu0 %v1200
        %1458 = vmatprep.subr.bf16.mxu0 %v1203
        %1459 = vmatpush1.bf16.msra.mxu0 %v1202
        %1460 = vmatprep.subr.bf16.mxu0 %v1205
        %1461 = vmatpush1.bf16.msra.mxu0 %v1204
        %1462 = vmatprep.subr.bf16.mxu0 %v1207
        %1463 = vmatpush1.bf16.msra.mxu0 %v1206
        %1464 = vmatprep.subr.bf16.mxu0 %v1209
        %1465 = vmatpush1.bf16.msra.mxu0 %v1208
        %1466 = vmatprep.subr.bf16.mxu0 %v1211
        %1467 = vmatpush1.bf16.msra.mxu0 %v1210
        %1468 = vmatprep.subr.bf16.mxu0 %v1213
        %1469 = vmatpush1.bf16.msra.mxu0 %v1212
        %1470 = vmatprep.subr.bf16.mxu0 %v1215
        %1471 = vmatpush1.bf16.msra.mxu0 %v1214
        %1472 = vmatprep.subr.bf16.mxu0 %v1217
        %1473 = vmatpush1.bf16.msra.mxu0 %v1216
        %1474 = vmatprep.subr.bf16.mxu0 %v1219
        %1475 = vmatpush1.bf16.msra.mxu0 %v1218
        %1476 = vmatprep.subr.bf16.mxu0 %v1221
        %1477 = vmatpush1.bf16.msra.mxu0 %v1220
        %1478 = vmatprep.subr.bf16.mxu0 %v1223
        %1479 = vmatpush1.bf16.msra.mxu0 %v1222
        %1480 = vmatprep.subr.bf16.mxu0 %v1225
        %1481 = vmatpush1.bf16.msra.mxu0 %v1224
        %1482 = vmatprep.subr.bf16.mxu0 %v1227
        %1483 = vmatpush1.bf16.msra.mxu0 %v1226
        %1484 = vmatprep.subr.bf16.mxu0 %v1229
        %1485 = vmatpush1.bf16.msra.mxu0 %v1228
        %1486 = vmatprep.mubr.bf16.mxu0 %v547
        %1487 = vmatmul.mubr.bf16.gmra.mrb[0].mxu0 %v546
        %v1488 = vpop.f32.mrb[0].mxu0
        %v1489 = vadd.f32 %v807, %v1488
        %v1490 = vpop.f32.mrb[0].mxu0
        %v1491 = vadd.f32 %v811, %v1490
        %v1492 = vpop.f32.mrb[0].mxu0
        %v1493 = vadd.f32 %v807, %v1492
        %v1494 = vpop.f32.mrb[0].mxu0
        %v1495 = vadd.f32 %v811, %v1494
        %1496 = vmatprep.mubr.bf16.mxu0 %v555
        %1497 = vmatmul.mubr.bf16.gmra.mrb[0].mxu0 %v554
        %v1498 = vpop.f32.mrb[0].mxu0
        %v1499 = vadd.f32 %v807, %v1498
        %v1500 = vpop.f32.mrb[0].mxu0
        %v1501 = vadd.f32 %v811, %v1500
        %v1502 = vpop.f32.mrb[0].mxu0
        %v1503 = vadd.f32 %v807, %v1502
        %v1504 = vpop.f32.mrb[0].mxu0
        %v1505 = vadd.f32 %v811, %v1504
        %1506 = vmatprep.mubr.bf16.mxu0 %v563
        %1507 = vmatmul.mubr.bf16.gmra.mrb[0].mxu0 %v562
        %v1508 = vpop.f32.mrb[0].mxu0
        %v1509 = vadd.f32 %v807, %v1508
        %v1510 = vpop.f32.mrb[0].mxu0
        %v1511 = vadd.f32 %v811, %v1510
        %v1512 = vpop.f32.mrb[0].mxu0
        %v1513 = vadd.f32 %v807, %v1512
        %v1514 = vpop.f32.mrb[0].mxu0
        %v1515 = vadd.f32 %v811, %v1514
        %1516 = vmatprep.mubr.bf16.mxu0 %v571
        %1517 = vmatmul.mubr.bf16.gmra.mrb[0].mxu0 %v570
        %v1518 = vpop.f32.mrb[0].mxu0
        %v1519 = vadd.f32 %v807, %v1518
        %v1520 = vpop.f32.mrb[0].mxu0
        %v1521 = vadd.f32 %v811, %v1520
        %v1522 = vpop.f32.mrb[0].mxu0
        %v1523 = vadd.f32 %v807, %v1522
        %v1524 = vpop.f32.mrb[0].mxu0
        %v1525 = vadd.f32 %v811, %v1524
        %1526 = vmatprep.mubr.bf16.mxu0 %v579
        %1527 = vmatmul.mubr.bf16.gmra.mrb[0].mxu0 %v578
        %v1528 = vpop.f32.mrb[0].mxu0
        %v1529 = vadd.f32 %v807, %v1528
        %v1530 = vpop.f32.mrb[0].mxu0
        %v1531 = vadd.f32 %v811, %v1530
        %v1532 = vpop.f32.mrb[0].mxu0
        %v1533 = vadd.f32 %v807, %v1532
        %v1534 = vpop.f32.mrb[0].mxu0
        %v1535 = vadd.f32 %v811, %v1534
        %1536 = vmatprep.mubr.bf16.mxu0 %v587
        %1537 = vmatmul.mubr.bf16.gmra.mrb[0].mxu0 %v586
        %v1538 = vpop.f32.mrb[0].mxu0
        %v1539 = vadd.f32 %v807, %v1538
        %v1540 = vpop.f32.mrb[0].mxu0
        %v1541 = vadd.f32 %v811, %v1540
        %v1542 = vpop.f32.mrb[0].mxu0
        %v1543 = vadd.f32 %v807, %v1542
        %v1544 = vpop.f32.mrb[0].mxu0
        %v1545 = vadd.f32 %v811, %v1544
        %1546 = vmatprep.mubr.bf16.mxu0 %v595
        %1547 = vmatmul.mubr.bf16.gmra.mrb[0].mxu0 %v594
        %v1548 = vpop.f32.mrb[0].mxu0
        %v1549 = vadd.f32 %v807, %v1548
        %v1550 = vpop.f32.mrb[0].mxu0
        %v1551 = vadd.f32 %v811, %v1550
        %v1552 = vpop.f32.mrb[0].mxu0
        %v1553 = vadd.f32 %v807, %v1552
        %v1554 = vpop.f32.mrb[0].mxu0
        %v1555 = vadd.f32 %v811, %v1554
        %1556 = vmatprep.mubr.bf16.mxu0 %v603
        %1557 = vmatmul.mubr.bf16.gmra.mrb[0].mxu0 %v602
        %v1558 = vpop.f32.mrb[0].mxu0
        %v1559 = vadd.f32 %v807, %v1558
        %v1560 = vpop.f32.mrb[0].mxu0
        %v1561 = vadd.f32 %v811, %v1560
        %v1562 = vpop.f32.mrb[0].mxu0
        %v1563 = vadd.f32 %v807, %v1562
        %v1564 = vpop.f32.mrb[0].mxu0
        %v1565 = vadd.f32 %v811, %v1564
        %1566 = vmatprep.mubr.bf16.mxu0 %v611
        %1567 = vmatmul.mubr.bf16.gmra.mrb[0].mxu0 %v610
        %v1568 = vpop.f32.mrb[0].mxu0
        %v1569 = vadd.f32 %v807, %v1568
        %v1570 = vpop.f32.mrb[0].mxu0
        %v1571 = vadd.f32 %v811, %v1570
        %v1572 = vpop.f32.mrb[0].mxu0
        %v1573 = vadd.f32 %v807, %v1572
        %v1574 = vpop.f32.mrb[0].mxu0
        %v1575 = vadd.f32 %v811, %v1574
        %1576 = vmatprep.mubr.bf16.mxu0 %v619
        %1577 = vmatmul.mubr.bf16.gmra.mrb[0].mxu0 %v618
        %v1578 = vpop.f32.mrb[0].mxu0
        %v1579 = vadd.f32 %v807, %v1578
        %v1580 = vpop.f32.mrb[0].mxu0
        %v1581 = vadd.f32 %v811, %v1580
        %v1582 = vpop.f32.mrb[0].mxu0
        %v1583 = vadd.f32 %v807, %v1582
        %v1584 = vpop.f32.mrb[0].mxu0
        %v1585 = vadd.f32 %v811, %v1584
        %1586 = vmatprep.mubr.bf16.mxu0 %v627
        %1587 = vmatmul.mubr.bf16.gmra.mrb[0].mxu0 %v626
        %v1588 = vpop.f32.mrb[0].mxu0
        %v1589 = vadd.f32 %v807, %v1588
        %v1590 = vpop.f32.mrb[0].mxu0
        %v1591 = vadd.f32 %v811, %v1590
        %v1592 = vpop.f32.mrb[0].mxu0
        %v1593 = vadd.f32 %v807, %v1592
        %v1594 = vpop.f32.mrb[0].mxu0
        %v1595 = vadd.f32 %v811, %v1594
        %1596 = vmatprep.mubr.bf16.mxu0 %v635
        %1597 = vmatmul.mubr.bf16.gmra.mrb[0].mxu0 %v634
        %v1598 = vpop.f32.mrb[0].mxu0
        %v1599 = vadd.f32 %v807, %v1598
        %v1600 = vpop.f32.mrb[0].mxu0
        %v1601 = vadd.f32 %v811, %v1600
        %v1602 = vpop.f32.mrb[0].mxu0
        %v1603 = vadd.f32 %v807, %v1602
        %v1604 = vpop.f32.mrb[0].mxu0
        %v1605 = vadd.f32 %v811, %v1604
        %1606 = vmatprep.mubr.bf16.mxu0 %v643
        %1607 = vmatmul.mubr.bf16.gmra.mrb[0].mxu0 %v642
        %v1608 = vpop.f32.mrb[0].mxu0
        %v1609 = vadd.f32 %v807, %v1608
        %v1610 = vpop.f32.mrb[0].mxu0
        %v1611 = vadd.f32 %v811, %v1610
        %v1612 = vpop.f32.mrb[0].mxu0
        %v1613 = vadd.f32 %v807, %v1612
        %v1614 = vpop.f32.mrb[0].mxu0
        %v1615 = vadd.f32 %v811, %v1614
        %1616 = vmatprep.mubr.bf16.mxu0 %v651
        %1617 = vmatmul.mubr.bf16.gmra.mrb[0].mxu0 %v650
        %v1618 = vpop.f32.mrb[0].mxu0
        %v1619 = vadd.f32 %v807, %v1618
        %v1620 = vpop.f32.mrb[0].mxu0
        %v1621 = vadd.f32 %v811, %v1620
        %v1622 = vpop.f32.mrb[0].mxu0
        %v1623 = vadd.f32 %v807, %v1622
        %v1624 = vpop.f32.mrb[0].mxu0
        %v1625 = vadd.f32 %v811, %v1624
        %1626 = vmatprep.mubr.bf16.mxu0 %v659
        %1627 = vmatmul.mubr.bf16.gmra.mrb[0].mxu0 %v658
        %v1628 = vpop.f32.mrb[0].mxu0
        %v1629 = vadd.f32 %v807, %v1628
        %v1630 = vpop.f32.mrb[0].mxu0
        %v1631 = vadd.f32 %v811, %v1630
        %v1632 = vpop.f32.mrb[0].mxu0
        %v1633 = vadd.f32 %v807, %v1632
        %v1634 = vpop.f32.mrb[0].mxu0
        %v1635 = vadd.f32 %v811, %v1634
        %1636 = vmatprep.mubr.bf16.mxu0 %v667
        %1637 = vmatmul.mubr.bf16.gmra.mrb[0].mxu0 %v666
        %v1638 = vpop.f32.mrb[0].mxu0
        %v1639 = vadd.f32 %v807, %v1638
        %v1640 = vpop.f32.mrb[0].mxu0
        %v1641 = vadd.f32 %v811, %v1640
        %v1642 = vpop.f32.mrb[0].mxu0
        %v1643 = vadd.f32 %v807, %v1642
        %v1644 = vpop.f32.mrb[0].mxu0
        %v1645 = vadd.f32 %v811, %v1644
        %1646 = vdwg.mxu0
        %1647 = vmatprep.subr.bf16.mxu0 %v1231
        %1648 = vmatpush1.bf16.msra.mxu0 %v1230
        %1649 = vmatprep.subr.bf16.mxu0 %v1233
        %1650 = vmatpush1.bf16.msra.mxu0 %v1232
        %1651 = vmatprep.subr.bf16.mxu0 %v1235
        %1652 = vmatpush1.bf16.msra.mxu0 %v1234
        %1653 = vmatprep.subr.bf16.mxu0 %v1237
        %1654 = vmatpush1.bf16.msra.mxu0 %v1236
        %1655 = vmatprep.subr.bf16.mxu0 %v1239
        %1656 = vmatpush1.bf16.msra.mxu0 %v1238
        %1657 = vmatprep.subr.bf16.mxu0 %v1241
        %1658 = vmatpush1.bf16.msra.mxu0 %v1240
        %1659 = vmatprep.subr.bf16.mxu0 %v1243
        %1660 = vmatpush1.bf16.msra.mxu0 %v1242
        %1661 = vmatprep.subr.bf16.mxu0 %v1245
        %1662 = vmatpush1.bf16.msra.mxu0 %v1244
        %1663 = vmatprep.subr.bf16.mxu0 %v1247
        %1664 = vmatpush1.bf16.msra.mxu0 %v1246
        %1665 = vmatprep.subr.bf16.mxu0 %v1249
        %1666 = vmatpush1.bf16.msra.mxu0 %v1248
        %1667 = vmatprep.subr.bf16.mxu0 %v1251
        %1668 = vmatpush1.bf16.msra.mxu0 %v1250
        %1669 = vmatprep.subr.bf16.mxu0 %v1253
        %1670 = vmatpush1.bf16.msra.mxu0 %v1252
        %1671 = vmatprep.subr.bf16.mxu0 %v1255
        %1672 = vmatpush1.bf16.msra.mxu0 %v1254
        %1673 = vmatprep.subr.bf16.mxu0 %v1257
        %1674 = vmatpush1.bf16.msra.mxu0 %v1256
        %1675 = vmatprep.subr.bf16.mxu0 %v1259
        %1676 = vmatpush1.bf16.msra.mxu0 %v1258
        %1677 = vmatprep.subr.bf16.mxu0 %v1261
        %1678 = vmatpush1.bf16.msra.mxu0 %v1260
        %1679 = vmatprep.mubr.bf16.mxu0 %v549
        %1680 = vmatmul.mubr.bf16.gmra.mrb[0].mxu0 %v548
        %v1681 = vpop.f32.mrb[0].mxu0
        %v1682 = vadd.f32 %v1489, %v1681
        %v1683 = vpop.f32.mrb[0].mxu0
        %v1684 = vadd.f32 %v1491, %v1683
        %v1685 = vpop.f32.mrb[0].mxu0
        %v1686 = vadd.f32 %v1493, %v1685
        %v1687 = vpop.f32.mrb[0].mxu0
        %v1688 = vadd.f32 %v1495, %v1687
        %1689 = vmatprep.mubr.bf16.mxu0 %v557
        %1690 = vmatmul.mubr.bf16.gmra.mrb[0].mxu0 %v556
        %v1691 = vpop.f32.mrb[0].mxu0
        %v1692 = vadd.f32 %v1499, %v1691
        %v1693 = vpop.f32.mrb[0].mxu0
        %v1694 = vadd.f32 %v1501, %v1693
        %v1695 = vpop.f32.mrb[0].mxu0
        %v1696 = vadd.f32 %v1503, %v1695
        %v1697 = vpop.f32.mrb[0].mxu0
        %v1698 = vadd.f32 %v1505, %v1697
        %1699 = vmatprep.mubr.bf16.mxu0 %v565
        %1700 = vmatmul.mubr.bf16.gmra.mrb[0].mxu0 %v564
        %v1701 = vpop.f32.mrb[0].mxu0
        %v1702 = vadd.f32 %v1509, %v1701
        %v1703 = vpop.f32.mrb[0].mxu0
        %v1704 = vadd.f32 %v1511, %v1703
        %v1705 = vpop.f32.mrb[0].mxu0
        %v1706 = vadd.f32 %v1513, %v1705
        %v1707 = vpop.f32.mrb[0].mxu0
        %v1708 = vadd.f32 %v1515, %v1707
        %1709 = vmatprep.mubr.bf16.mxu0 %v573
        %1710 = vmatmul.mubr.bf16.gmra.mrb[0].mxu0 %v572
        %v1711 = vpop.f32.mrb[0].mxu0
        %v1712 = vadd.f32 %v1519, %v1711
        %v1713 = vpop.f32.mrb[0].mxu0
        %v1714 = vadd.f32 %v1521, %v1713
        %v1715 = vpop.f32.mrb[0].mxu0
        %v1716 = vadd.f32 %v1523, %v1715
        %v1717 = vpop.f32.mrb[0].mxu0
        %v1718 = vadd.f32 %v1525, %v1717
        %1719 = vmatprep.mubr.bf16.mxu0 %v581
        %1720 = vmatmul.mubr.bf16.gmra.mrb[0].mxu0 %v580
        %v1721 = vpop.f32.mrb[0].mxu0
        %v1722 = vadd.f32 %v1529, %v1721
        %v1723 = vpop.f32.mrb[0].mxu0
        %v1724 = vadd.f32 %v1531, %v1723
        %v1725 = vpop.f32.mrb[0].mxu0
        %v1726 = vadd.f32 %v1533, %v1725
        %v1727 = vpop.f32.mrb[0].mxu0
        %v1728 = vadd.f32 %v1535, %v1727
        %1729 = vmatprep.mubr.bf16.mxu0 %v589
        %1730 = vmatmul.mubr.bf16.gmra.mrb[0].mxu0 %v588
        %v1731 = vpop.f32.mrb[0].mxu0
        %v1732 = vadd.f32 %v1539, %v1731
        %v1733 = vpop.f32.mrb[0].mxu0
        %v1734 = vadd.f32 %v1541, %v1733
        %v1735 = vpop.f32.mrb[0].mxu0
        %v1736 = vadd.f32 %v1543, %v1735
        %v1737 = vpop.f32.mrb[0].mxu0
        %v1738 = vadd.f32 %v1545, %v1737
        %1739 = vmatprep.mubr.bf16.mxu0 %v597
        %1740 = vmatmul.mubr.bf16.gmra.mrb[0].mxu0 %v596
        %v1741 = vpop.f32.mrb[0].mxu0
        %v1742 = vadd.f32 %v1549, %v1741
        %v1743 = vpop.f32.mrb[0].mxu0
        %v1744 = vadd.f32 %v1551, %v1743
        %v1745 = vpop.f32.mrb[0].mxu0
        %v1746 = vadd.f32 %v1553, %v1745
        %v1747 = vpop.f32.mrb[0].mxu0
        %v1748 = vadd.f32 %v1555, %v1747
        %1749 = vmatprep.mubr.bf16.mxu0 %v605
        %1750 = vmatmul.mubr.bf16.gmra.mrb[0].mxu0 %v604
        %v1751 = vpop.f32.mrb[0].mxu0
        %v1752 = vadd.f32 %v1559, %v1751
        %v1753 = vpop.f32.mrb[0].mxu0
        %v1754 = vadd.f32 %v1561, %v1753
        %v1755 = vpop.f32.mrb[0].mxu0
        %v1756 = vadd.f32 %v1563, %v1755
        %v1757 = vpop.f32.mrb[0].mxu0
        %v1758 = vadd.f32 %v1565, %v1757
        %1759 = vmatprep.mubr.bf16.mxu0 %v613
        %1760 = vmatmul.mubr.bf16.gmra.mrb[0].mxu0 %v612
        %v1761 = vpop.f32.mrb[0].mxu0
        %v1762 = vadd.f32 %v1569, %v1761
        %v1763 = vpop.f32.mrb[0].mxu0
        %v1764 = vadd.f32 %v1571, %v1763
        %v1765 = vpop.f32.mrb[0].mxu0
        %v1766 = vadd.f32 %v1573, %v1765
        %v1767 = vpop.f32.mrb[0].mxu0
        %v1768 = vadd.f32 %v1575, %v1767
        %1769 = vmatprep.mubr.bf16.mxu0 %v621
        %1770 = vmatmul.mubr.bf16.gmra.mrb[0].mxu0 %v620
        %v1771 = vpop.f32.mrb[0].mxu0
        %v1772 = vadd.f32 %v1579, %v1771
        %v1773 = vpop.f32.mrb[0].mxu0
        %v1774 = vadd.f32 %v1581, %v1773
        %v1775 = vpop.f32.mrb[0].mxu0
        %v1776 = vadd.f32 %v1583, %v1775
        %v1777 = vpop.f32.mrb[0].mxu0
        %v1778 = vadd.f32 %v1585, %v1777
        %1779 = vmatprep.mubr.bf16.mxu0 %v629
        %1780 = vmatmul.mubr.bf16.gmra.mrb[0].mxu0 %v628
        %v1781 = vpop.f32.mrb[0].mxu0
        %v1782 = vadd.f32 %v1589, %v1781
        %v1783 = vpop.f32.mrb[0].mxu0
        %v1784 = vadd.f32 %v1591, %v1783
        %v1785 = vpop.f32.mrb[0].mxu0
        %v1786 = vadd.f32 %v1593, %v1785
        %v1787 = vpop.f32.mrb[0].mxu0
        %v1788 = vadd.f32 %v1595, %v1787
        %1789 = vmatprep.mubr.bf16.mxu0 %v637
        %1790 = vmatmul.mubr.bf16.gmra.mrb[0].mxu0 %v636
        %v1791 = vpop.f32.mrb[0].mxu0
        %v1792 = vadd.f32 %v1599, %v1791
        %v1793 = vpop.f32.mrb[0].mxu0
        %v1794 = vadd.f32 %v1601, %v1793
        %v1795 = vpop.f32.mrb[0].mxu0
        %v1796 = vadd.f32 %v1603, %v1795
        %v1797 = vpop.f32.mrb[0].mxu0
        %v1798 = vadd.f32 %v1605, %v1797
        %1799 = vmatprep.mubr.bf16.mxu0 %v645
        %1800 = vmatmul.mubr.bf16.gmra.mrb[0].mxu0 %v644
        %v1801 = vpop.f32.mrb[0].mxu0
        %v1802 = vadd.f32 %v1609, %v1801
        %v1803 = vpop.f32.mrb[0].mxu0
        %v1804 = vadd.f32 %v1611, %v1803
        %v1805 = vpop.f32.mrb[0].mxu0
        %v1806 = vadd.f32 %v1613, %v1805
        %v1807 = vpop.f32.mrb[0].mxu0
        %v1808 = vadd.f32 %v1615, %v1807
        %1809 = vmatprep.mubr.bf16.mxu0 %v653
        %1810 = vmatmul.mubr.bf16.gmra.mrb[0].mxu0 %v652
        %v1811 = vpop.f32.mrb[0].mxu0
        %v1812 = vadd.f32 %v1619, %v1811
        %v1813 = vpop.f32.mrb[0].mxu0
        %v1814 = vadd.f32 %v1621, %v1813
        %v1815 = vpop.f32.mrb[0].mxu0
        %v1816 = vadd.f32 %v1623, %v1815
        %v1817 = vpop.f32.mrb[0].mxu0
        %v1818 = vadd.f32 %v1625, %v1817
        %1819 = vmatprep.mubr.bf16.mxu0 %v661
        %1820 = vmatmul.mubr.bf16.gmra.mrb[0].mxu0 %v660
        %v1821 = vpop.f32.mrb[0].mxu0
        %v1822 = vadd.f32 %v1629, %v1821
        %v1823 = vpop.f32.mrb[0].mxu0
        %v1824 = vadd.f32 %v1631, %v1823
        %v1825 = vpop.f32.mrb[0].mxu0
        %v1826 = vadd.f32 %v1633, %v1825
        %v1827 = vpop.f32.mrb[0].mxu0
        %v1828 = vadd.f32 %v1635, %v1827
        %1829 = vmatprep.mubr.bf16.mxu0 %v669
        %1830 = vmatmul.mubr.bf16.gmra.mrb[0].mxu0 %v668
        %v1831 = vpop.f32.mrb[0].mxu0
        %v1832 = vadd.f32 %v1639, %v1831
        %v1833 = vpop.f32.mrb[0].mxu0
        %v1834 = vadd.f32 %v1641, %v1833
        %v1835 = vpop.f32.mrb[0].mxu0
        %v1836 = vadd.f32 %v1643, %v1835
        %v1837 = vpop.f32.mrb[0].mxu0
        %v1838 = vadd.f32 %v1645, %v1837
        %1839 = vdwg.mxu0
        %1840 = vmatprep.subr.bf16.mxu0 %v1263
        %1841 = vmatpush1.bf16.msra.mxu0 %v1262
        %1842 = vmatprep.subr.bf16.mxu0 %v1265
        %1843 = vmatpush1.bf16.msra.mxu0 %v1264
        %1844 = vmatprep.subr.bf16.mxu0 %v1267
        %1845 = vmatpush1.bf16.msra.mxu0 %v1266
        %1846 = vmatprep.subr.bf16.mxu0 %v1269
        %1847 = vmatpush1.bf16.msra.mxu0 %v1268
        %1848 = vmatprep.subr.bf16.mxu0 %v1271
        %1849 = vmatpush1.bf16.msra.mxu0 %v1270
        %1850 = vmatprep.subr.bf16.mxu0 %v1273
        %1851 = vmatpush1.bf16.msra.mxu0 %v1272
        %1852 = vmatprep.subr.bf16.mxu0 %v1275
        %1853 = vmatpush1.bf16.msra.mxu0 %v1274
        %1854 = vmatprep.subr.bf16.mxu0 %v1277
        %1855 = vmatpush1.bf16.msra.mxu0 %v1276
        %1856 = vmatprep.subr.bf16.mxu0 %v1279
        %1857 = vmatpush1.bf16.msra.mxu0 %v1278
        %1858 = vmatprep.subr.bf16.mxu0 %v1281
        %1859 = vmatpush1.bf16.msra.mxu0 %v1280
        %1860 = vmatprep.subr.bf16.mxu0 %v1283
        %1861 = vmatpush1.bf16.msra.mxu0 %v1282
        %1862 = vmatprep.subr.bf16.mxu0 %v1285
        %1863 = vmatpush1.bf16.msra.mxu0 %v1284
        %1864 = vmatprep.subr.bf16.mxu0 %v1287
        %1865 = vmatpush1.bf16.msra.mxu0 %v1286
        %1866 = vmatprep.subr.bf16.mxu0 %v1289
        %1867 = vmatpush1.bf16.msra.mxu0 %v1288
        %1868 = vmatprep.subr.bf16.mxu0 %v1291
        %1869 = vmatpush1.bf16.msra.mxu0 %v1290
        %1870 = vmatprep.subr.bf16.mxu0 %v1293
        %1871 = vmatpush1.bf16.msra.mxu0 %v1292
        %1872 = vmatprep.mubr.bf16.mxu0 %v551
        %1873 = vmatmul.mubr.bf16.gmra.mrb[0].mxu0 %v550
        %v1874 = vpop.f32.mrb[0].mxu0
        %v1875 = vadd.f32 %v1682, %v1874
        %v1876 = vpop.f32.mrb[0].mxu0
        %v1877 = vadd.f32 %v1684, %v1876
        %v1878 = vpop.f32.mrb[0].mxu0
        %v1879 = vadd.f32 %v1686, %v1878
        %v1880 = vpop.f32.mrb[0].mxu0
        %v1881 = vadd.f32 %v1688, %v1880
        %1882 = vmatprep.mubr.bf16.mxu0 %v559
        %1883 = vmatmul.mubr.bf16.gmra.mrb[0].mxu0 %v558
        %v1884 = vpop.f32.mrb[0].mxu0
        %v1885 = vadd.f32 %v1692, %v1884
        %v1886 = vpop.f32.mrb[0].mxu0
        %v1887 = vadd.f32 %v1694, %v1886
        %v1888 = vpop.f32.mrb[0].mxu0
        %v1889 = vadd.f32 %v1696, %v1888
        %v1890 = vpop.f32.mrb[0].mxu0
        %v1891 = vadd.f32 %v1698, %v1890
        %1892 = vmatprep.mubr.bf16.mxu0 %v567
        %1893 = vmatmul.mubr.bf16.gmra.mrb[0].mxu0 %v566
        %v1894 = vpop.f32.mrb[0].mxu0
        %v1895 = vadd.f32 %v1702, %v1894
        %v1896 = vpop.f32.mrb[0].mxu0
        %v1897 = vadd.f32 %v1704, %v1896
        %v1898 = vpop.f32.mrb[0].mxu0
        %v1899 = vadd.f32 %v1706, %v1898
        %v1900 = vpop.f32.mrb[0].mxu0
        %v1901 = vadd.f32 %v1708, %v1900
        %1902 = vmatprep.mubr.bf16.mxu0 %v575
        %1903 = vmatmul.mubr.bf16.gmra.mrb[0].mxu0 %v574
        %v1904 = vpop.f32.mrb[0].mxu0
        %v1905 = vadd.f32 %v1712, %v1904
        %v1906 = vpop.f32.mrb[0].mxu0
        %v1907 = vadd.f32 %v1714, %v1906
        %v1908 = vpop.f32.mrb[0].mxu0
        %v1909 = vadd.f32 %v1716, %v1908
        %v1910 = vpop.f32.mrb[0].mxu0
        %v1911 = vadd.f32 %v1718, %v1910
        %1912 = vmatprep.mubr.bf16.mxu0 %v583
        %1913 = vmatmul.mubr.bf16.gmra.mrb[0].mxu0 %v582
        %v1914 = vpop.f32.mrb[0].mxu0
        %v1915 = vadd.f32 %v1722, %v1914
        %v1916 = vpop.f32.mrb[0].mxu0
        %v1917 = vadd.f32 %v1724, %v1916
        %v1918 = vpop.f32.mrb[0].mxu0
        %v1919 = vadd.f32 %v1726, %v1918
        %v1920 = vpop.f32.mrb[0].mxu0
        %v1921 = vadd.f32 %v1728, %v1920
        %1922 = vmatprep.mubr.bf16.mxu0 %v591
        %1923 = vmatmul.mubr.bf16.gmra.mrb[0].mxu0 %v590
        %v1924 = vpop.f32.mrb[0].mxu0
        %v1925 = vadd.f32 %v1732, %v1924
        %v1926 = vpop.f32.mrb[0].mxu0
        %v1927 = vadd.f32 %v1734, %v1926
        %v1928 = vpop.f32.mrb[0].mxu0
        %v1929 = vadd.f32 %v1736, %v1928
        %v1930 = vpop.f32.mrb[0].mxu0
        %v1931 = vadd.f32 %v1738, %v1930
        %1932 = vmatprep.mubr.bf16.mxu0 %v599
        %1933 = vmatmul.mubr.bf16.gmra.mrb[0].mxu0 %v598
        %v1934 = vpop.f32.mrb[0].mxu0
        %v1935 = vadd.f32 %v1742, %v1934
        %v1936 = vpop.f32.mrb[0].mxu0
        %v1937 = vadd.f32 %v1744, %v1936
        %v1938 = vpop.f32.mrb[0].mxu0
        %v1939 = vadd.f32 %v1746, %v1938
        %v1940 = vpop.f32.mrb[0].mxu0
        %v1941 = vadd.f32 %v1748, %v1940
        %1942 = vmatprep.mubr.bf16.mxu0 %v607
        %1943 = vmatmul.mubr.bf16.gmra.mrb[0].mxu0 %v606
        %v1944 = vpop.f32.mrb[0].mxu0
        %v1945 = vadd.f32 %v1752, %v1944
        %v1946 = vpop.f32.mrb[0].mxu0
        %v1947 = vadd.f32 %v1754, %v1946
        %v1948 = vpop.f32.mrb[0].mxu0
        %v1949 = vadd.f32 %v1756, %v1948
        %v1950 = vpop.f32.mrb[0].mxu0
        %v1951 = vadd.f32 %v1758, %v1950
        %1952 = vmatprep.mubr.bf16.mxu0 %v615
        %1953 = vmatmul.mubr.bf16.gmra.mrb[0].mxu0 %v614
        %v1954 = vpop.f32.mrb[0].mxu0
        %v1955 = vadd.f32 %v1762, %v1954
        %v1956 = vpop.f32.mrb[0].mxu0
        %v1957 = vadd.f32 %v1764, %v1956
        %v1958 = vpop.f32.mrb[0].mxu0
        %v1959 = vadd.f32 %v1766, %v1958
        %v1960 = vpop.f32.mrb[0].mxu0
        %v1961 = vadd.f32 %v1768, %v1960
        %1962 = vmatprep.mubr.bf16.mxu0 %v623
        %1963 = vmatmul.mubr.bf16.gmra.mrb[0].mxu0 %v622
        %v1964 = vpop.f32.mrb[0].mxu0
        %v1965 = vadd.f32 %v1772, %v1964
        %v1966 = vpop.f32.mrb[0].mxu0
        %v1967 = vadd.f32 %v1774, %v1966
        %v1968 = vpop.f32.mrb[0].mxu0
        %v1969 = vadd.f32 %v1776, %v1968
        %v1970 = vpop.f32.mrb[0].mxu0
        %v1971 = vadd.f32 %v1778, %v1970
        %1972 = vmatprep.mubr.bf16.mxu0 %v631
        %1973 = vmatmul.mubr.bf16.gmra.mrb[0].mxu0 %v630
        %v1974 = vpop.f32.mrb[0].mxu0
        %v1975 = vadd.f32 %v1782, %v1974
        %v1976 = vpop.f32.mrb[0].mxu0
        %v1977 = vadd.f32 %v1784, %v1976
        %v1978 = vpop.f32.mrb[0].mxu0
        %v1979 = vadd.f32 %v1786, %v1978
        %v1980 = vpop.f32.mrb[0].mxu0
        %v1981 = vadd.f32 %v1788, %v1980
        %1982 = vmatprep.mubr.bf16.mxu0 %v639
        %1983 = vmatmul.mubr.bf16.gmra.mrb[0].mxu0 %v638
        %v1984 = vpop.f32.mrb[0].mxu0
        %v1985 = vadd.f32 %v1792, %v1984
        %v1986 = vpop.f32.mrb[0].mxu0
        %v1987 = vadd.f32 %v1794, %v1986
        %v1988 = vpop.f32.mrb[0].mxu0
        %v1989 = vadd.f32 %v1796, %v1988
        %v1990 = vpop.f32.mrb[0].mxu0
        %v1991 = vadd.f32 %v1798, %v1990
        %1992 = vmatprep.mubr.bf16.mxu0 %v647
        %1993 = vmatmul.mubr.bf16.gmra.mrb[0].mxu0 %v646
        %v1994 = vpop.f32.mrb[0].mxu0
        %v1995 = vadd.f32 %v1802, %v1994
        %v1996 = vpop.f32.mrb[0].mxu0
        %v1997 = vadd.f32 %v1804, %v1996
        %v1998 = vpop.f32.mrb[0].mxu0
        %v1999 = vadd.f32 %v1806, %v1998
        %v2000 = vpop.f32.mrb[0].mxu0
        %v2001 = vadd.f32 %v1808, %v2000
        %2002 = vmatprep.mubr.bf16.mxu0 %v655
        %2003 = vmatmul.mubr.bf16.gmra.mrb[0].mxu0 %v654
        %v2004 = vpop.f32.mrb[0].mxu0
        %v2005 = vadd.f32 %v1812, %v2004
        %v2006 = vpop.f32.mrb[0].mxu0
        %v2007 = vadd.f32 %v1814, %v2006
        %v2008 = vpop.f32.mrb[0].mxu0
        %v2009 = vadd.f32 %v1816, %v2008
        %v2010 = vpop.f32.mrb[0].mxu0
        %v2011 = vadd.f32 %v1818, %v2010
        %2012 = vmatprep.mubr.bf16.mxu0 %v663
        %2013 = vmatmul.mubr.bf16.gmra.mrb[0].mxu0 %v662
        %v2014 = vpop.f32.mrb[0].mxu0
        %v2015 = vadd.f32 %v1822, %v2014
        %v2016 = vpop.f32.mrb[0].mxu0
        %v2017 = vadd.f32 %v1824, %v2016
        %v2018 = vpop.f32.mrb[0].mxu0
        %v2019 = vadd.f32 %v1826, %v2018
        %v2020 = vpop.f32.mrb[0].mxu0
        %v2021 = vadd.f32 %v1828, %v2020
        %2022 = vmatprep.mubr.bf16.mxu0 %v671
        %2023 = vmatmul.mubr.bf16.gmra.mrb[0].mxu0 %v670
        %v2024 = vpop.f32.mrb[0].mxu0
        %v2025 = vadd.f32 %v1832, %v2024
        %v2026 = vpop.f32.mrb[0].mxu0
        %v2027 = vadd.f32 %v1834, %v2026
        %v2028 = vpop.f32.mrb[0].mxu0
        %v2029 = vadd.f32 %v1836, %v2028
        %v2030 = vpop.f32.mrb[0].mxu0
        %v2031 = vadd.f32 %v1838, %v2030
        %2032 = vdwg.mxu0
        %2033 = vmatprep.subr.bf16.mxu0 %v1295
        %2034 = vmatpush1.bf16.msra.mxu0 %v1294
        %2035 = vmatprep.subr.bf16.mxu0 %v1297
        %2036 = vmatpush1.bf16.msra.mxu0 %v1296
        %2037 = vmatprep.subr.bf16.mxu0 %v1299
        %2038 = vmatpush1.bf16.msra.mxu0 %v1298
        %2039 = vmatprep.subr.bf16.mxu0 %v1301
        %2040 = vmatpush1.bf16.msra.mxu0 %v1300
        %2041 = vmatprep.subr.bf16.mxu0 %v1303
        %2042 = vmatpush1.bf16.msra.mxu0 %v1302
        %2043 = vmatprep.subr.bf16.mxu0 %v1305
        %2044 = vmatpush1.bf16.msra.mxu0 %v1304
        %2045 = vmatprep.subr.bf16.mxu0 %v1307
        %2046 = vmatpush1.bf16.msra.mxu0 %v1306
        %2047 = vmatprep.subr.bf16.mxu0 %v1309
        %2048 = vmatpush1.bf16.msra.mxu0 %v1308
        %2049 = vmatprep.subr.bf16.mxu0 %v1311
        %2050 = vmatpush1.bf16.msra.mxu0 %v1310
        %2051 = vmatprep.subr.bf16.mxu0 %v1313
        %2052 = vmatpush1.bf16.msra.mxu0 %v1312
        %2053 = vmatprep.subr.bf16.mxu0 %v1315
        %2054 = vmatpush1.bf16.msra.mxu0 %v1314
        %2055 = vmatprep.subr.bf16.mxu0 %v1317
        %2056 = vmatpush1.bf16.msra.mxu0 %v1316
        %2057 = vmatprep.subr.bf16.mxu0 %v1319
        %2058 = vmatpush1.bf16.msra.mxu0 %v1318
        %2059 = vmatprep.subr.bf16.mxu0 %v1321
        %2060 = vmatpush1.bf16.msra.mxu0 %v1320
        %2061 = vmatprep.subr.bf16.mxu0 %v1323
        %2062 = vmatpush1.bf16.msra.mxu0 %v1322
        %2063 = vmatprep.subr.bf16.mxu0 %v1325
        %2064 = vmatpush1.bf16.msra.mxu0 %v1324
        %2065 = vmatprep.mubr.bf16.mxu0 %v553
        %2066 = vmatmul.mubr.bf16.gmra.mrb[0].mxu0 %v552
        %v2067 = vpop.f32.mrb[0].mxu0
        %v2068 = vadd.f32 %v1875, %v2067
        %v2069 = vpop.f32.mrb[0].mxu0
        %v2070 = vadd.f32 %v1877, %v2069
        %v2071 = vpop.f32.mrb[0].mxu0
        %v2072 = vadd.f32 %v1879, %v2071
        %v2073 = vpop.f32.mrb[0].mxu0
        %v2074 = vadd.f32 %v1881, %v2073
        %2075 = vmatprep.mubr.bf16.mxu0 %v561
        %2076 = vmatmul.mubr.bf16.gmra.mrb[0].mxu0 %v560
        %v2077 = vpop.f32.mrb[0].mxu0
        %v2078 = vadd.f32 %v1885, %v2077
        %v2079 = vpop.f32.mrb[0].mxu0
        %v2080 = vadd.f32 %v1887, %v2079
        %v2081 = vpop.f32.mrb[0].mxu0
        %v2082 = vadd.f32 %v1889, %v2081
        %v2083 = vpop.f32.mrb[0].mxu0
        %v2084 = vadd.f32 %v1891, %v2083
        %2085 = vmatprep.mubr.bf16.mxu0 %v569
        %2086 = vmatmul.mubr.bf16.gmra.mrb[0].mxu0 %v568
        %v2087 = vpop.f32.mrb[0].mxu0
        %v2088 = vadd.f32 %v1895, %v2087
        %v2089 = vpop.f32.mrb[0].mxu0
        %v2090 = vadd.f32 %v1897, %v2089
        %v2091 = vpop.f32.mrb[0].mxu0
        %v2092 = vadd.f32 %v1899, %v2091
        %v2093 = vpop.f32.mrb[0].mxu0
        %v2094 = vadd.f32 %v1901, %v2093
        %2095 = vmatprep.mubr.bf16.mxu0 %v577
        %2096 = vmatmul.mubr.bf16.gmra.mrb[0].mxu0 %v576
        %v2097 = vpop.f32.mrb[0].mxu0
        %v2098 = vadd.f32 %v1905, %v2097
        %v2099 = vpop.f32.mrb[0].mxu0
        %v2100 = vadd.f32 %v1907, %v2099
        %v2101 = vpop.f32.mrb[0].mxu0
        %v2102 = vadd.f32 %v1909, %v2101
        %v2103 = vpop.f32.mrb[0].mxu0
        %v2104 = vadd.f32 %v1911, %v2103
        %2105 = vmatprep.mubr.bf16.mxu0 %v585
        %2106 = vmatmul.mubr.bf16.gmra.mrb[0].mxu0 %v584
        %v2107 = vpop.f32.mrb[0].mxu0
        %v2108 = vadd.f32 %v1915, %v2107
        %v2109 = vpop.f32.mrb[0].mxu0
        %v2110 = vadd.f32 %v1917, %v2109
        %v2111 = vpop.f32.mrb[0].mxu0
        %v2112 = vadd.f32 %v1919, %v2111
        %v2113 = vpop.f32.mrb[0].mxu0
        %v2114 = vadd.f32 %v1921, %v2113
        %2115 = vmatprep.mubr.bf16.mxu0 %v593
        %2116 = vmatmul.mubr.bf16.gmra.mrb[0].mxu0 %v592
        %v2117 = vpop.f32.mrb[0].mxu0
        %v2118 = vadd.f32 %v1925, %v2117
        %v2119 = vpop.f32.mrb[0].mxu0
        %v2120 = vadd.f32 %v1927, %v2119
        %v2121 = vpop.f32.mrb[0].mxu0
        %v2122 = vadd.f32 %v1929, %v2121
        %v2123 = vpop.f32.mrb[0].mxu0
        %v2124 = vadd.f32 %v1931, %v2123
        %2125 = vmatprep.mubr.bf16.mxu0 %v601
        %2126 = vmatmul.mubr.bf16.gmra.mrb[0].mxu0 %v600
        %v2127 = vpop.f32.mrb[0].mxu0
        %v2128 = vadd.f32 %v1935, %v2127
        %v2129 = vpop.f32.mrb[0].mxu0
        %v2130 = vadd.f32 %v1937, %v2129
        %v2131 = vpop.f32.mrb[0].mxu0
        %v2132 = vadd.f32 %v1939, %v2131
        %v2133 = vpop.f32.mrb[0].mxu0
        %v2134 = vadd.f32 %v1941, %v2133
        %2135 = vmatprep.mubr.bf16.mxu0 %v609
        %2136 = vmatmul.mubr.bf16.gmra.mrb[0].mxu0 %v608
        %v2137 = vpop.f32.mrb[0].mxu0
        %v2138 = vadd.f32 %v1945, %v2137
        %v2139 = vpop.f32.mrb[0].mxu0
        %v2140 = vadd.f32 %v1947, %v2139
        %v2141 = vpop.f32.mrb[0].mxu0
        %v2142 = vadd.f32 %v1949, %v2141
        %v2143 = vpop.f32.mrb[0].mxu0
        %v2144 = vadd.f32 %v1951, %v2143
        %2145 = vmatprep.mubr.bf16.mxu0 %v617
        %2146 = vmatmul.mubr.bf16.gmra.mrb[0].mxu0 %v616
        %v2147 = vpop.f32.mrb[0].mxu0
        %v2148 = vadd.f32 %v1955, %v2147
        %v2149 = vpop.f32.mrb[0].mxu0
        %v2150 = vadd.f32 %v1957, %v2149
        %v2151 = vpop.f32.mrb[0].mxu0
        %v2152 = vadd.f32 %v1959, %v2151
        %v2153 = vpop.f32.mrb[0].mxu0
        %v2154 = vadd.f32 %v1961, %v2153
        %2155 = vmatprep.mubr.bf16.mxu0 %v625
        %2156 = vmatmul.mubr.bf16.gmra.mrb[0].mxu0 %v624
        %v2157 = vpop.f32.mrb[0].mxu0
        %v2158 = vadd.f32 %v1965, %v2157
        %v2159 = vpop.f32.mrb[0].mxu0
        %v2160 = vadd.f32 %v1967, %v2159
        %v2161 = vpop.f32.mrb[0].mxu0
        %v2162 = vadd.f32 %v1969, %v2161
        %v2163 = vpop.f32.mrb[0].mxu0
        %v2164 = vadd.f32 %v1971, %v2163
        %2165 = vmatprep.mubr.bf16.mxu0 %v633
        %2166 = vmatmul.mubr.bf16.gmra.mrb[0].mxu0 %v632
        %v2167 = vpop.f32.mrb[0].mxu0
        %v2168 = vadd.f32 %v1975, %v2167
        %v2169 = vpop.f32.mrb[0].mxu0
        %v2170 = vadd.f32 %v1977, %v2169
        %v2171 = vpop.f32.mrb[0].mxu0
        %v2172 = vadd.f32 %v1979, %v2171
        %v2173 = vpop.f32.mrb[0].mxu0
        %v2174 = vadd.f32 %v1981, %v2173
        %2175 = vmatprep.mubr.bf16.mxu0 %v641
        %2176 = vmatmul.mubr.bf16.gmra.mrb[0].mxu0 %v640
        %v2177 = vpop.f32.mrb[0].mxu0
        %v2178 = vadd.f32 %v1985, %v2177
        %v2179 = vpop.f32.mrb[0].mxu0
        %v2180 = vadd.f32 %v1987, %v2179
        %v2181 = vpop.f32.mrb[0].mxu0
        %v2182 = vadd.f32 %v1989, %v2181
        %v2183 = vpop.f32.mrb[0].mxu0
        %v2184 = vadd.f32 %v1991, %v2183
        %2185 = vmatprep.mubr.bf16.mxu0 %v649
        %2186 = vmatmul.mubr.bf16.gmra.mrb[0].mxu0 %v648
        %v2187 = vpop.f32.mrb[0].mxu0
        %v2188 = vadd.f32 %v1995, %v2187
        %v2189 = vpop.f32.mrb[0].mxu0
        %v2190 = vadd.f32 %v1997, %v2189
        %v2191 = vpop.f32.mrb[0].mxu0
        %v2192 = vadd.f32 %v1999, %v2191
        %v2193 = vpop.f32.mrb[0].mxu0
        %v2194 = vadd.f32 %v2001, %v2193
        %2195 = vmatprep.mubr.bf16.mxu0 %v657
        %2196 = vmatmul.mubr.bf16.gmra.mrb[0].mxu0 %v656
        %v2197 = vpop.f32.mrb[0].mxu0
        %v2198 = vadd.f32 %v2005, %v2197
        %v2199 = vpop.f32.mrb[0].mxu0
        %v2200 = vadd.f32 %v2007, %v2199
        %v2201 = vpop.f32.mrb[0].mxu0
        %v2202 = vadd.f32 %v2009, %v2201
        %v2203 = vpop.f32.mrb[0].mxu0
        %v2204 = vadd.f32 %v2011, %v2203
        %2205 = vmatprep.mubr.bf16.mxu0 %v665
        %2206 = vmatmul.mubr.bf16.gmra.mrb[0].mxu0 %v664
        %v2207 = vpop.f32.mrb[0].mxu0
        %v2208 = vadd.f32 %v2015, %v2207
        %v2209 = vpop.f32.mrb[0].mxu0
        %v2210 = vadd.f32 %v2017, %v2209
        %v2211 = vpop.f32.mrb[0].mxu0
        %v2212 = vadd.f32 %v2019, %v2211
        %v2213 = vpop.f32.mrb[0].mxu0
        %v2214 = vadd.f32 %v2021, %v2213
        %2215 = vmatprep.mubr.bf16.mxu0 %v673
        %2216 = vmatmul.mubr.bf16.gmra.mrb[0].mxu0 %v672
        %v2217 = vpop.f32.mrb[0].mxu0
        %v2218 = vadd.f32 %v2025, %v2217
        %v2219 = vpop.f32.mrb[0].mxu0
        %v2220 = vadd.f32 %v2027, %v2219
        %v2221 = vpop.f32.mrb[0].mxu0
        %v2222 = vadd.f32 %v2029, %v2221
        %v2223 = vpop.f32.mrb[0].mxu0
        %v2224 = vadd.f32 %v2031, %v2223
        %2225 = vdwg.mxu0
        %v2226 = vtanh.pop %v2068
        %v2227 = vtanh.pop %v2070
        %v2228 = vtanh.pop %v2072
        %v2229 = vtanh.pop %v2074
        %v2230 = vtanh.pop %v2078
        %v2231 = vtanh.pop %v2080
        %v2232 = vtanh.pop %v2082
        %v2233 = vtanh.pop %v2084
        %v2234 = vtanh.pop %v2088
        %v2235 = vtanh.pop %v2090
        %v2236 = vtanh.pop %v2092
        %v2237 = vtanh.pop %v2094
        %v2238 = vtanh.pop %v2098
        %v2239 = vtanh.pop %v2100
        %v2240 = vtanh.pop %v2102
        %v2241 = vtanh.pop %v2104
        %v2242 = vtanh.pop %v2108
        %v2243 = vtanh.pop %v2110
        %v2244 = vtanh.pop %v2112
        %v2245 = vtanh.pop %v2114
        %v2246 = vtanh.pop %v2118
        %v2247 = vtanh.pop %v2120
        %v2248 = vtanh.pop %v2122
        %v2249 = vtanh.pop %v2124
        %v2250 = vtanh.pop %v2128
        %v2251 = vtanh.pop %v2130
        %v2252 = vtanh.pop %v2132
        %v2253 = vtanh.pop %v2134
        %v2254 = vtanh.pop %v2138
        %v2255 = vtanh.pop %v2140
        %v2256 = vtanh.pop %v2142
        %v2257 = vtanh.pop %v2144
        %v2258 = vtanh.pop %v2148
        %v2259 = vtanh.pop %v2150
        %v2260 = vtanh.pop %v2152
        %v2261 = vtanh.pop %v2154
        %v2262 = vtanh.pop %v2158
        %v2263 = vtanh.pop %v2160
        %v2264 = vtanh.pop %v2162
        %v2265 = vtanh.pop %v2164
        %v2266 = vtanh.pop %v2168
        %v2267 = vtanh.pop %v2170
        %v2268 = vtanh.pop %v2172
        %v2269 = vtanh.pop %v2174
        %v2270 = vtanh.pop %v2178
        %v2271 = vtanh.pop %v2180
        %v2272 = vtanh.pop %v2182
        %v2273 = vtanh.pop %v2184
        %v2274 = vtanh.pop %v2188
        %v2275 = vtanh.pop %v2190
        %v2276 = vtanh.pop %v2192
        %v2277 = vtanh.pop %v2194
        %v2278 = vtanh.pop %v2198
        %v2279 = vtanh.pop %v2200
        %v2280 = vtanh.pop %v2202
        %v2281 = vtanh.pop %v2204
        %v2282 = vtanh.pop %v2208
        %v2283 = vtanh.pop %v2210
        %v2284 = vtanh.pop %v2212
        %v2285 = vtanh.pop %v2214
        %v2286 = vtanh.pop %v2218
        %v2287 = vtanh.pop %v2220
        %v2288 = vtanh.pop %v2222
        %v2289 = vtanh.pop %v2224
        %v2290 = vld [vmem:[#allocation8] sm:$0x3]
        %v2292 = vlaneseq
        %v2293 = vshrl.u32 %v2292, 7
        %v2294 = vsub.s32 0, %v2293
        %v2295 = vrot.slane %v2290, %v2294
        %v2296 = vlaneseq
        %v2297 = vshrl.u32 %v2296, 7
        %v2298 = vsub.s32 1, %v2297
        %v2299 = vrot.slane %v2290, %v2298
        %v2302 = vmul.f32 %v2226, %v2295
        %v2303 = vmul.f32 %v2227, %v2299
        %v2304 = vmul.f32 %v2228, %v2295
        %v2305 = vmul.f32 %v2229, %v2299
        %v2306 = vmul.f32 %v2230, %v2295
        %v2307 = vmul.f32 %v2231, %v2299
        %v2308 = vmul.f32 %v2232, %v2295
        %v2309 = vmul.f32 %v2233, %v2299
        %v2310 = vmul.f32 %v2234, %v2295
        %v2311 = vmul.f32 %v2235, %v2299
        %v2312 = vmul.f32 %v2236, %v2295
        %v2313 = vmul.f32 %v2237, %v2299
        %v2314 = vmul.f32 %v2238, %v2295
        %v2315 = vmul.f32 %v2239, %v2299
        %v2316 = vmul.f32 %v2240, %v2295
        %v2317 = vmul.f32 %v2241, %v2299
        %v2318 = vmul.f32 %v2242, %v2295
        %v2319 = vmul.f32 %v2243, %v2299
        %v2320 = vmul.f32 %v2244, %v2295
        %v2321 = vmul.f32 %v2245, %v2299
        %v2322 = vmul.f32 %v2246, %v2295
        %v2323 = vmul.f32 %v2247, %v2299
        %v2324 = vmul.f32 %v2248, %v2295
        %v2325 = vmul.f32 %v2249, %v2299
        %v2326 = vmul.f32 %v2250, %v2295
        %v2327 = vmul.f32 %v2251, %v2299
        %v2328 = vmul.f32 %v2252, %v2295
        %v2329 = vmul.f32 %v2253, %v2299
        %v2330 = vmul.f32 %v2254, %v2295
        %v2331 = vmul.f32 %v2255, %v2299
        %v2332 = vmul.f32 %v2256, %v2295
        %v2333 = vmul.f32 %v2257, %v2299
        %v2334 = vmul.f32 %v2258, %v2295
        %v2335 = vmul.f32 %v2259, %v2299
        %v2336 = vmul.f32 %v2260, %v2295
        %v2337 = vmul.f32 %v2261, %v2299
        %v2338 = vmul.f32 %v2262, %v2295
        %v2339 = vmul.f32 %v2263, %v2299
        %v2340 = vmul.f32 %v2264, %v2295
        %v2341 = vmul.f32 %v2265, %v2299
        %v2342 = vmul.f32 %v2266, %v2295
        %v2343 = vmul.f32 %v2267, %v2299
        %v2344 = vmul.f32 %v2268, %v2295
        %v2345 = vmul.f32 %v2269, %v2299
        %v2346 = vmul.f32 %v2270, %v2295
        %v2347 = vmul.f32 %v2271, %v2299
        %v2348 = vmul.f32 %v2272, %v2295
        %v2349 = vmul.f32 %v2273, %v2299
        %v2350 = vmul.f32 %v2274, %v2295
        %v2351 = vmul.f32 %v2275, %v2299
        %v2352 = vmul.f32 %v2276, %v2295
        %v2353 = vmul.f32 %v2277, %v2299
        %v2354 = vmul.f32 %v2278, %v2295
        %v2355 = vmul.f32 %v2279, %v2299
        %v2356 = vmul.f32 %v2280, %v2295
        %v2357 = vmul.f32 %v2281, %v2299
        %v2358 = vmul.f32 %v2282, %v2295
        %v2359 = vmul.f32 %v2283, %v2299
        %v2360 = vmul.f32 %v2284, %v2295
        %v2361 = vmul.f32 %v2285, %v2299
        %v2362 = vmul.f32 %v2286, %v2295
        %v2363 = vmul.f32 %v2287, %v2299
        %v2364 = vmul.f32 %v2288, %v2295
        %v2365 = vmul.f32 %v2289, %v2299
        %v2366 = vadd.f32 %v2302, %v2303
        %2367 = vadd.xlane.f32.xlu0 %v2366
        %v2368 = vpop.xlane.xlu0 %2367
        %v2369 = vadd.f32 %v2304, %v2305
        %2370 = vadd.xlane.f32.xlu0 %v2369
        %v2371 = vpop.xlane.xlu0 %2370
        %v2372 = vadd.f32 %v2306, %v2307
        %2373 = vadd.xlane.f32.xlu0 %v2372
        %v2374 = vpop.xlane.xlu0 %2373
        %v2375 = vadd.f32 %v2308, %v2309
        %2376 = vadd.xlane.f32.xlu0 %v2375
        %v2377 = vpop.xlane.xlu0 %2376
        %v2378 = vadd.f32 %v2310, %v2311
        %2379 = vadd.xlane.f32.xlu0 %v2378
        %v2380 = vpop.xlane.xlu0 %2379
        %v2381 = vadd.f32 %v2312, %v2313
        %2382 = vadd.xlane.f32.xlu0 %v2381
        %v2383 = vpop.xlane.xlu0 %2382
        %v2384 = vadd.f32 %v2314, %v2315
        %2385 = vadd.xlane.f32.xlu0 %v2384
        %v2386 = vpop.xlane.xlu0 %2385
        %v2387 = vadd.f32 %v2316, %v2317
        %2388 = vadd.xlane.f32.xlu0 %v2387
        %v2389 = vpop.xlane.xlu0 %2388
        %v2390 = vadd.f32 %v2318, %v2319
        %2391 = vadd.xlane.f32.xlu0 %v2390
        %v2392 = vpop.xlane.xlu0 %2391
        %v2393 = vadd.f32 %v2320, %v2321
        %2394 = vadd.xlane.f32.xlu0 %v2393
        %v2395 = vpop.xlane.xlu0 %2394
        %v2396 = vadd.f32 %v2322, %v2323
        %2397 = vadd.xlane.f32.xlu0 %v2396
        %v2398 = vpop.xlane.xlu0 %2397
        %v2399 = vadd.f32 %v2324, %v2325
        %2400 = vadd.xlane.f32.xlu0 %v2399
        %v2401 = vpop.xlane.xlu0 %2400
        %v2402 = vadd.f32 %v2326, %v2327
        %2403 = vadd.xlane.f32.xlu0 %v2402
        %v2404 = vpop.xlane.xlu0 %2403
        %v2405 = vadd.f32 %v2328, %v2329
        %2406 = vadd.xlane.f32.xlu0 %v2405
        %v2407 = vpop.xlane.xlu0 %2406
        %v2408 = vadd.f32 %v2330, %v2331
        %2409 = vadd.xlane.f32.xlu0 %v2408
        %v2410 = vpop.xlane.xlu0 %2409
        %v2411 = vadd.f32 %v2332, %v2333
        %2412 = vadd.xlane.f32.xlu0 %v2411
        %v2413 = vpop.xlane.xlu0 %2412
        %v2414 = vadd.f32 %v2334, %v2335
        %2415 = vadd.xlane.f32.xlu0 %v2414
        %v2416 = vpop.xlane.xlu0 %2415
        %v2417 = vadd.f32 %v2336, %v2337
        %2418 = vadd.xlane.f32.xlu0 %v2417
        %v2419 = vpop.xlane.xlu0 %2418
        %v2420 = vadd.f32 %v2338, %v2339
        %2421 = vadd.xlane.f32.xlu0 %v2420
        %v2422 = vpop.xlane.xlu0 %2421
        %v2423 = vadd.f32 %v2340, %v2341
        %2424 = vadd.xlane.f32.xlu0 %v2423
        %v2425 = vpop.xlane.xlu0 %2424
        %v2426 = vadd.f32 %v2342, %v2343
        %2427 = vadd.xlane.f32.xlu0 %v2426
        %v2428 = vpop.xlane.xlu0 %2427
        %v2429 = vadd.f32 %v2344, %v2345
        %2430 = vadd.xlane.f32.xlu0 %v2429
        %v2431 = vpop.xlane.xlu0 %2430
        %v2432 = vadd.f32 %v2346, %v2347
        %2433 = vadd.xlane.f32.xlu0 %v2432
        %v2434 = vpop.xlane.xlu0 %2433
        %v2435 = vadd.f32 %v2348, %v2349
        %2436 = vadd.xlane.f32.xlu0 %v2435
        %v2437 = vpop.xlane.xlu0 %2436
        %v2438 = vadd.f32 %v2350, %v2351
        %2439 = vadd.xlane.f32.xlu0 %v2438
        %v2440 = vpop.xlane.xlu0 %2439
        %v2441 = vadd.f32 %v2352, %v2353
        %2442 = vadd.xlane.f32.xlu0 %v2441
        %v2443 = vpop.xlane.xlu0 %2442
        %v2444 = vadd.f32 %v2354, %v2355
        %2445 = vadd.xlane.f32.xlu0 %v2444
        %v2446 = vpop.xlane.xlu0 %2445
        %v2447 = vadd.f32 %v2356, %v2357
        %2448 = vadd.xlane.f32.xlu0 %v2447
        %v2449 = vpop.xlane.xlu0 %2448
        %v2450 = vadd.f32 %v2358, %v2359
        %2451 = vadd.xlane.f32.xlu0 %v2450
        %v2452 = vpop.xlane.xlu0 %2451
        %v2453 = vadd.f32 %v2360, %v2361
        %2454 = vadd.xlane.f32.xlu0 %v2453
        %v2455 = vpop.xlane.xlu0 %2454
        %v2456 = vadd.f32 %v2362, %v2363
        %2457 = vadd.xlane.f32.xlu0 %v2456
        %v2458 = vpop.xlane.xlu0 %2457
        %v2459 = vadd.f32 %v2364, %v2365
        %2460 = vadd.xlane.f32.xlu0 %v2459
        %v2461 = vpop.xlane.xlu0 %2460
        %v2462 = vld [vmem:[#allocation2] sm:$0x1]
        %v2464 = vlaneseq
        %v2465 = vshrl.u32 %v2464, 7
        %v2466 = vsub.s32 0, %v2465
        %v2467 = vrot.slane %v2462, %v2466
        %v2469 = vadd.f32 %v2368, %v2467
        %v2470 = vadd.f32 %v2371, %v2467
        %v2471 = vadd.f32 %v2374, %v2467
        %v2472 = vadd.f32 %v2377, %v2467
        %v2473 = vadd.f32 %v2380, %v2467
        %v2474 = vadd.f32 %v2383, %v2467
        %v2475 = vadd.f32 %v2386, %v2467
        %v2476 = vadd.f32 %v2389, %v2467
        %v2477 = vadd.f32 %v2392, %v2467
        %v2478 = vadd.f32 %v2395, %v2467
        %v2479 = vadd.f32 %v2398, %v2467
        %v2480 = vadd.f32 %v2401, %v2467
        %v2481 = vadd.f32 %v2404, %v2467
        %v2482 = vadd.f32 %v2407, %v2467
        %v2483 = vadd.f32 %v2410, %v2467
        %v2484 = vadd.f32 %v2413, %v2467
        %v2485 = vadd.f32 %v2416, %v2467
        %v2486 = vadd.f32 %v2419, %v2467
        %v2487 = vadd.f32 %v2422, %v2467
        %v2488 = vadd.f32 %v2425, %v2467
        %v2489 = vadd.f32 %v2428, %v2467
        %v2490 = vadd.f32 %v2431, %v2467
        %v2491 = vadd.f32 %v2434, %v2467
        %v2492 = vadd.f32 %v2437, %v2467
        %v2493 = vadd.f32 %v2440, %v2467
        %v2494 = vadd.f32 %v2443, %v2467
        %v2495 = vadd.f32 %v2446, %v2467
        %v2496 = vadd.f32 %v2449, %v2467
        %v2497 = vadd.f32 %v2452, %v2467
        %v2498 = vadd.f32 %v2455, %v2467
        %v2499 = vadd.f32 %v2458, %v2467
        %v2500 = vadd.f32 %v2461, %v2467
        %vm2501 = vcmask 7168
        %2502 = vst.msk [vmem:[%s288] sm:$0xff] %vm2501, %v2469
        %2503 = vst.msk [vmem:[%s288 + $0x8] sm:$0xff] %vm2501, %v2470
        %2504 = vst.msk [vmem:[%s288 + $0x10] sm:$0xff] %vm2501, %v2471
        %2505 = vst.msk [vmem:[%s288 + $0x18] sm:$0xff] %vm2501, %v2472
        %2506 = vst.msk [vmem:[%s288 + $0x20] sm:$0xff] %vm2501, %v2473
        %2507 = vst.msk [vmem:[%s288 + $0x28] sm:$0xff] %vm2501, %v2474
        %2508 = vst.msk [vmem:[%s288 + $0x30] sm:$0xff] %vm2501, %v2475
        %2509 = vst.msk [vmem:[%s288 + $0x38] sm:$0xff] %vm2501, %v2476
        %2510 = vst.msk [vmem:[%s288 + $0x40] sm:$0xff] %vm2501, %v2477
        %2511 = vst.msk [vmem:[%s288 + $0x48] sm:$0xff] %vm2501, %v2478
        %2512 = vst.msk [vmem:[%s288 + $0x50] sm:$0xff] %vm2501, %v2479
        %2513 = vst.msk [vmem:[%s288 + $0x58] sm:$0xff] %vm2501, %v2480
        %2514 = vst.msk [vmem:[%s288 + $0x60] sm:$0xff] %vm2501, %v2481
        %2515 = vst.msk [vmem:[%s288 + $0x68] sm:$0xff] %vm2501, %v2482
        %2516 = vst.msk [vmem:[%s288 + $0x70] sm:$0xff] %vm2501, %v2483
        %2517 = vst.msk [vmem:[%s288 + $0x78] sm:$0xff] %vm2501, %v2484
        %2518 = vst.msk [vmem:[%s288 + $0x80] sm:$0xff] %vm2501, %v2485
        %2519 = vst.msk [vmem:[%s288 + $0x88] sm:$0xff] %vm2501, %v2486
        %2520 = vst.msk [vmem:[%s288 + $0x90] sm:$0xff] %vm2501, %v2487
        %2521 = vst.msk [vmem:[%s288 + $0x98] sm:$0xff] %vm2501, %v2488
        %2522 = vst.msk [vmem:[%s288 + $0xa0] sm:$0xff] %vm2501, %v2489
        %2523 = vst.msk [vmem:[%s288 + $0xa8] sm:$0xff] %vm2501, %v2490
        %2524 = vst.msk [vmem:[%s288 + $0xb0] sm:$0xff] %vm2501, %v2491
        %2525 = vst.msk [vmem:[%s288 + $0xb8] sm:$0xff] %vm2501, %v2492
        %2526 = vst.msk [vmem:[%s288 + $0xc0] sm:$0xff] %vm2501, %v2493
        %2527 = vst.msk [vmem:[%s288 + $0xc8] sm:$0xff] %vm2501, %v2494
        %2528 = vst.msk [vmem:[%s288 + $0xd0] sm:$0xff] %vm2501, %v2495
        %2529 = vst.msk [vmem:[%s288 + $0xd8] sm:$0xff] %vm2501, %v2496
        %2530 = vst.msk [vmem:[%s288 + $0xe0] sm:$0xff] %vm2501, %v2497
        %2531 = vst.msk [vmem:[%s288 + $0xe8] sm:$0xff] %vm2501, %v2498
        %2532 = vst.msk [vmem:[%s288 + $0xf0] sm:$0xff] %vm2501, %v2499
        %2533 = vst.msk [vmem:[%s288 + $0xf8] sm:$0xff] %vm2501, %v2500
        %s2534 = smul.u32 32, %s23
        %p2535 = scmp.lt.s32.totalorder %s2534, 63
        %s2536 = scalar_select %p2535, %s2534, 63
        %s2537 = smul.addr %s2536, 8
        %s2538 = scalar_lea.vmem %s5, %s2537
        // Predicated region
        $region57: #{tpu_custom_call.1} parent=39 // pred_check
          %p2539 = pneg %p151
        $region58: #{tpu_custom_call.1} parent=39 // pred_check_branch
          %2541 = sbr.rel (%p2539) target = $region60
        $region59: #{tpu_custom_call.1} parent=39 // pred_region
          %s2542 = smul.u32 32, %s23
        $region60: #{tpu_custom_call.1} parent=39 // pred_fallthru
          _
      $region40: #{tpu_custom_call.1} parent=5 // pred_fallthru
        _
      %p2543 = scmp.le.s32.totalorder 2, %s18
      // Predicated region
      $region61: #{tpu_custom_call.1} parent=5 // pred_check
        %p2544 = pneg %p2543
      $region62: #{tpu_custom_call.1} parent=5 // pred_check_branch
        %2546 = sbr.rel (%p2544) target = $region64
      $region63: #{tpu_custom_call.1} parent=5 // pred_region
        %s2547 = ssub.s32 %s18, 2
        // Predicated region
        $region65: #{tpu_custom_call.1} parent=63 // pred_check
          %p2548 = pneg %p157
        $region66: #{tpu_custom_call.1} parent=63 // pred_check_branch
          %2550 = sbr.rel (%p2548) target = $region68
        $region67: #{tpu_custom_call.1} parent=63 // pred_region
          %s2551 = smul.u32 32, %s24
          %p2552 = scmp.lt.s32.totalorder %s2551, 63
          %s2553 = scalar_select %p2552, %s2551, 63
          %s2554 = smul.addr %s2553, 8
          %s2555 = scalar_lea.vmem %s5, %s2554
        $region68: #{tpu_custom_call.1} parent=63 // pred_fallthru
          _
      $region64: #{tpu_custom_call.1} parent=5 // pred_fallthru
        _
    $region6: #{tpu_custom_call.1} parent=1 // loop_footer
      %s22 = sadd.s32 1, %s18
    $region7: #{tpu_custom_call.1} parent=1 // loop_footer_branch
      %17 = sbr.rel target = $region3
    $region8: #{tpu_custom_call.1} parent=1 // loop_exit
      _
    %2556 = vsyncpa [#allocation4], 1
    %s2557 = scalar_lea.sflag [#allocation4], 1
    %2558 = vsyncpa %s2557, 1
    %2559 = vsyncpa [#allocation6], 1
    %2560 = vsyncpa [#allocation9], 1

</llo_original>
